<compile_context>
chip_gen: v5e
topology: v5e:2x2
jax: 0.10.0
libtpu: 0.0.40
codegen_flags: <defaults>
</compile_context>

<pallas_src>
import functools

import jax
import jax.numpy as jnp
from jax.experimental import pallas as pl
from jax.experimental.pallas import tpu as pltpu


LANE = 128


def _ru(x, m=LANE):
    """Round up to a multiple of m."""
    return ((x + m - 1) // m) * m


def _softmax_tanh_bounded(x):
    # Inputs come out of tanh (|x| <= 1) -> exp cannot overflow; skip the max-subtraction.
    e = jnp.exp(x)                                         # EUP
    return e / jnp.sum(e, axis=-1, keepdims=True)


def _sigmoid(x):
    # sigmoid(x) = 0.5*(tanh(x/2)+1): tanh on EUP, no divide on the per-step critical path.
    return 0.5 * (jnp.tanh(0.5 * x) + 1.0)


def raim_kernel(x_ref,        # (TB, T, F)       input batch tile (f32)
                wfused_ref,   # (H, GAB + 4*GH)  [wha | whb | pad | whh(i,f,g,o)]
                wih_ref,      # (F, 4*GH)        LSTM weight_ih^T (gates contiguous if H<128)
                wp_ref,       # (H, Lp)          prediction weight, lane-padded to 128
                packed_ref,   # (1, 2W+2F+4H)    [bha+baa | bhb+bab | waa | wab | b_ih+b_hh]
                out_ref,      # (TB, Lp)         lane-dense output (bias added in wrapper)
                *, window):
    B, T, F = x_ref.shape
    W = window
    H = wfused_ref.shape[0]
    GH = wih_ref.shape[1] // 4                 # per-gate stride (H while H < 128)
    GAB = wfused_ref.shape[1] - 4 * GH         # 128-lane-aligned start of the gate segment
    f32 = jnp.float32
    mxu = wfused_ref.dtype                     # f32 or bf16 (MXU operands only)

    # ---- hoisted loads / broadcasts ------------------------------------------------------
    x = x_ref[...]                             # (B, T, F) f32
    w_fused = wfused_ref[...]
    w_ih = wih_ref[...]
    w_p = wp_ref[...]
    pk = packed_ref[...]                       # (1, P) f32

    oba, obb = 0, W                            # packed-vector offsets
    owaa, owab = W + F, W + 2 * F
    obl = 2 * W + 2 * F

    b_alpha = jnp.broadcast_to(pk[:, oba:oba + W], (B, W))
    b_beta = jnp.broadcast_to(pk[:, obb:obb + F], (B, F))
    b_gate = [jnp.broadcast_to(pk[:, obl + k * H: obl + (k + 1) * H], (B, H)) for k in range(4)]
    waa_row = pk[:, owaa:owaa + F].reshape(1, 1, F)
    wab_row = pk[:, owab:owab + W]             # (1, W)

    # ---- x-only attention projections, hoisted out of the time loop -----------------------
    # alpha x-term: per-timestep projection X . waa -> (B, T), left-padded with W-1 zeros
    # (== ConstantPad1d((W-1, 0)); padded rows contribute only the baa bias, already in b_alpha).
    xproj_a = jnp.sum(x * waa_row, axis=2)                                   # (B, T)
    if W > 1:
        xa_full = jnp.concatenate([jnp.zeros((B, W - 1), f32), xproj_a], axis=1)
    else:
        xa_full = xproj_a                                                    # (B, T+W-1)

    # beta x-term: causal temporal conv of X with wab -> (B, T, F) (sum of W shifted copies).
    xb_all = jnp.zeros((B, T, F), f32)
    for s in range(W):                         # s = steps back in time
        j = owab + (W - 1 - s)
        coef = jnp.broadcast_to(pk[:, j:j + 1].reshape(1, 1, 1), (B, T, F))
        if s == 0:
            shifted = x
        else:
            shifted = jnp.concatenate(
                [jnp.zeros((B, s, F), f32), x[:, :T - s, :]], axis=1)
        xb_all = xb_all + coef * shifted

    h = jnp.zeros((B, H), f32)
    c = jnp.zeros((B, H), f32)
    h_sum = jnp.zeros((B, H), f32)

    # TODO(synk): for long sequences (T >> 32) convert this static unroll to
    # lax.fori_loop(..., unroll=4..8) carrying (h, c, h_sum) over a pre-padded window buffer.
    for t in range(T):
        # one fused h-matmul: [alpha_pre_h | beta_pre_h | gates_h], compact 128+4H columns
        hfeat = jnp.dot(h.astype(mxu), w_fused, preferred_element_type=f32)  # (B, GAB+4GH)

        alpha = _softmax_tanh_bounded(
            jnp.tanh(hfeat[:, 0:W] + xa_full[:, t:t + W] + b_alpha))         # (B, W)
        beta = _softmax_tanh_bounded(
            jnp.tanh(hfeat[:, W:W + F] + xb_all[:, t, :] + b_beta))          # (B, F)

        # z[b,f] = beta[b,f] * sum_w alpha[b,w] * X[b, t-W+1+w, f]   (zero-padded window)
        z_raw = jnp.zeros((B, F), f32)
        for w in range(W):
            src = t - (W - 1) + w
            if src >= 0:
                z_raw = z_raw + alpha[:, w:w + 1] * x[:, src, :]
        z = beta * z_raw

        # LSTMCell (PyTorch gate order i, f, g, o)
        gates = hfeat[:, GAB:] + jnp.dot(z.astype(mxu), w_ih,
                                         preferred_element_type=f32)         # (B, 4GH)
        i_g = _sigmoid(gates[:, 0 * GH:0 * GH + H] + b_gate[0])
        f_g = _sigmoid(gates[:, 1 * GH:1 * GH + H] + b_gate[1])
        g_g = jnp.tanh(gates[:, 2 * GH:2 * GH + H] + b_gate[2])
        o_g = _sigmoid(gates[:, 3 * GH:3 * GH + H] + b_gate[3])
        c = f_g * c + i_g * g_g
        h = o_g * jnp.tanh(c)

        h_sum = h_sum + h                      # prediction matmul hoisted out of the loop

    # sum_t (h_t @ wp + bp) == h_sum @ wp + T*bp ; bias added in the wrapper.
    out = jnp.dot(h_sum.astype(mxu), w_p, preferred_element_type=f32)        # (B, Lp)
    out_ref[...] = out.astype(out_ref.dtype)


def _pack_params(params, window_size, label_size, mxu_dtype):
    """Fused / lane-friendly weight layout expected by the kernel."""
    wha, whb, whh, wih = params["wha"], params["whb"], params["whh"], params["wih"]
    H, W = wha.shape
    F = whb.shape[1]
    L = label_size
    GAB = _ru(W + F)                                   # gates start on a 128-lane boundary
    GH = H if H < LANE else _ru(H)                     # compact gates while H < 128

    w_fused = jnp.zeros((H, GAB + 4 * GH), jnp.float32)
    w_fused = w_fused.at[:, 0:W].set(wha)
    w_fused = w_fused.at[:, W:W + F].set(whb)
    wih_p = jnp.zeros((F, 4 * GH), jnp.float32)
    for k in range(4):
        w_fused = w_fused.at[:, GAB + k * GH: GAB + k * GH + H].set(whh[:, k * H:(k + 1) * H])
        wih_p = wih_p.at[:, k * GH: k * GH + H].set(wih[:, k * H:(k + 1) * H])

    wp_p = jnp.zeros((H, _ru(L)), jnp.float32).at[:, :L].set(params["wp"])

    packed = jnp.concatenate(
        [params["bha"] + params["baa"],                # (1, W)
         params["bhb"] + params["bab"],                # (1, F)
         params["waa"],                                # (1, F)
         params["wab"],                                # (1, W)
         params["blstm"]], axis=1).astype(jnp.float32)  # (1, 4H)  -> (1, 2W+2F+4H)

    return (w_fused.astype(mxu_dtype), wih_p.astype(mxu_dtype),
            wp_p.astype(mxu_dtype), packed)


def _choose_batch_tile(B):
    """Largest useful batch tile: one tile for tiny batches; for bigger batches split into
    >= 2 tiles (<= 256 rows each) so the 'parallel' axis can shard across v7x's 2 TCs and
    per-grid-step / DMA overhead stays amortized."""
    Bp8 = _ru(B, 8)
    if Bp8 <= 32:
        return Bp8
    return min(256, _ru((Bp8 + 1) // 2, 8))


def build_model_forward(X, params, window_size, *, mxu_dtype=jnp.float32, batch_tile=None):
    """Pallas equivalent of BuildModel.forward (no v_lengths branch). Returns (B, label_size)."""
    B, T, F = X.shape
    W = window_size
    L = params["wp"].shape[1]
    Lp = _ru(L)

    w_fused, wih_p, wp_p, packed = _pack_params(params, W, L, mxu_dtype)

    TB = batch_tile if batch_tile is not None else _choose_batch_tile(B)
    Bp = _ru(B, TB)
    Xp = X.astype(jnp.float32)
    if Bp != B:
        Xp = jnp.pad(Xp, ((0, Bp - B), (0, 0), (0, 0)))

    kernel = functools.partial(raim_kernel, window=W)

    in_specs = [
        pl.BlockSpec((TB, T, F), lambda i: (i, 0, 0)),
        pl.BlockSpec(w_fused.shape, lambda i: (0, 0)),
        pl.BlockSpec(wih_p.shape, lambda i: (0, 0)),
        pl.BlockSpec(wp_p.shape, lambda i: (0, 0)),
        pl.BlockSpec(packed.shape, lambda i: (0, 0)),
    ]

    out = pl.pallas_call(
        kernel,
        out_shape=jax.ShapeDtypeStruct((Bp, Lp), jnp.float32),
        grid=(Bp // TB,),
        in_specs=in_specs,
        out_specs=pl.BlockSpec((TB, Lp), lambda i: (i, 0)),
        compiler_params=pltpu.CompilerParams(dimension_semantics=("parallel",)),
    )(Xp, w_fused, wih_p, wp_p, packed)

    # T*bp folded here (outside the kernel); slice off batch/label padding.
    return out[:B, :L] + float(T) * params["bp"]


def init_params(key, input_size, window_size, hidden_size, label_size):
    """Deterministic synthetic parameters (PyTorch-style uniform fan-in init), pre-transposed."""
    F, W, H, L = input_size, window_size, hidden_size, label_size
    ks = jax.random.split(key, 13)

    def u(k, shape, fan_in):
        b = 1.0 / float(fan_in) ** 0.5
        return jax.random.uniform(k, shape, jnp.float32, -b, b)

    return dict(
        wha=u(ks[0], (H, W), H), bha=u(ks[1], (1, W), H),          # w_h_alpha: Linear(H, W)
        waa=u(ks[2], (1, F), F), baa=u(ks[3], (1, 1), F),          # w_a_alpha: Linear(F, 1)
        whb=u(ks[4], (H, F), H), bhb=u(ks[5], (1, F), H),          # w_h_beta : Linear(H, F)
        wab=u(ks[6], (1, W), W), bab=u(ks[7], (1, 1), W),          # w_a_beta : Linear(W, 1)
        wih=u(ks[8], (F, 4 * H), H),                               # LSTMCell weight_ih^T
        whh=u(ks[9], (H, 4 * H), H),                               # LSTMCell weight_hh^T
        blstm=u(ks[10], (1, 4 * H), H),                            # b_ih + b_hh (combined)
        wp=u(ks[11], (H, L), H), bp=u(ks[12], (1, L), H),          # predict_func: Linear(H, L)
    )


def reference_forward(X, params, window_size):
    """Pure-JAX mirror of the PyTorch forward, for correctness checking (uses raw params)."""
    B, T, F = X.shape
    W = window_size
    H = params["whh"].shape[0]
    xpad = jnp.pad(X, ((0, 0), (W - 1, 0), (0, 0)))
    h = jnp.zeros((B, H), jnp.float32)
    c = jnp.zeros((B, H), jnp.float32)
    preds = []
    for t in range(T):
        cur_x = xpad[:, t:t + W, :]
        a_pre = (h @ params["wha"] + params["bha"]
                 + (cur_x.reshape(-1, F) @ params["waa"].T + params["baa"]).reshape(B, W))
        alpha = jax.nn.softmax(jnp.tanh(a_pre), axis=-1)
        b_pre = (h @ params["whb"] + params["bhb"]
                 + (jnp.transpose(cur_x, (0, 2, 1)).reshape(-1, W) @ params["wab"].T
                    + params["bab"]).reshape(B, F))
        beta = jax.nn.softmax(jnp.tanh(b_pre), axis=-1)
        weight_A = alpha[:, :, None] * beta[:, None, :]
        z = jnp.sum(weight_A * cur_x, axis=1)
        gates = z @ params["wih"] + h @ params["whh"] + params["blstm"]
        i_g = jax.nn.sigmoid(gates[:, 0:H])
        f_g = jax.nn.sigmoid(gates[:, H:2 * H])
        g_g = jnp.tanh(gates[:, 2 * H:3 * H])
        o_g = jax.nn.sigmoid(gates[:, 3 * H:4 * H])
        c = f_g * c + i_g * g_g
        h = o_g * jnp.tanh(c)
        preds.append(h @ params["wp"] + params["bp"])
    all_output = jnp.stack(preds, axis=1)          # (B, T, L)
    return jnp.sum(all_output, axis=1)             # cur_output


if __name__ == "__main__":
    key = jax.random.PRNGKey(0)
    k_x, k_p, k_x2 = jax.random.split(key, 3)

    # small shapes consistent with the module: batch=2, timesteps=8, features=4,
    # window=3, hidden=16 (output_size == hidden_size so predict_func is well-formed), labels=1
    B, T, F = 2, 8, 4
    W, H, L = 3, 16, 1

    X = jax.random.normal(k_x, (B, T, F), jnp.float32)
    params = init_params(k_p, F, W, H, L)

    # ---- exact f32-MXU path, tiny batch (single tile) -------------------------------------
    out = jax.block_until_ready(build_model_forward(X, params, W))
    ref = reference_forward(X, params, W)
    assert out.shape == (B, L), out.shape
    assert jnp.allclose(out, ref, atol=1e-4, rtol=1e-4), (out, ref)

    # ---- larger batch exercising the multi-tile "parallel" grid path ----------------------
    B2 = 300
    X2 = jax.random.normal(k_x2, (B2, T, F), jnp.float32)
    out2 = jax.block_until_ready(build_model_forward(X2, params, W))
    ref2 = reference_forward(X2, params, W)
    assert out2.shape == (B2, L), out2.shape
    assert jnp.allclose(out2, ref2, atol=1e-4, rtol=1e-4)

    # ---- bf16-MXU-operand variant (v6e/v7x); elementwise math stays f32 -------------------
    # loose tolerance reflects bf16 weight/activation quantization in the matmuls only.
    out_bf = jax.block_until_ready(
        build_model_forward(X2, params, W, mxu_dtype=jnp.bfloat16))
    assert out_bf.shape == (B2, L), out_bf.shape
    assert bool(jnp.all(jnp.isfinite(out_bf)))
    assert jnp.allclose(out_bf, ref2, atol=1e-1, rtol=1e-1)

    print("KERNEL_OK")
</pallas_src>

<mosaic_0001>
module attributes {stable_mosaic.version = 11 : i64} {
  func.func @raim_kernel(%arg0: i32, %arg1: memref<8x8x4xf32, #tpu.memory_space<vmem>>, %arg2: memref<16x192xf32, #tpu.memory_space<vmem>>, %arg3: memref<4x64xf32, #tpu.memory_space<vmem>>, %arg4: memref<16x128xf32, #tpu.memory_space<vmem>>, %arg5: memref<1x78xf32, #tpu.memory_space<vmem>>, %arg6: memref<8x128xf32, #tpu.memory_space<vmem>>) attributes {dimension_semantics = [#tpu.dimension_semantics<parallel>], iteration_bounds = array<i64: 1>, scalar_prefetch = 0 : i64, scratch_operands = 0 : i64, tpu.core_type = #tpu.core_type<tc>, window_params = [{transform_indices = @transform_0, window_bounds = array<i64: 8, 8, 4>}, {pipeline_mode = #tpu.pipeline_mode<synchronous>, transform_indices = @transform_1, window_bounds = array<i64: 16, 192>}, {pipeline_mode = #tpu.pipeline_mode<synchronous>, transform_indices = @transform_2, window_bounds = array<i64: 4, 64>}, {pipeline_mode = #tpu.pipeline_mode<synchronous>, transform_indices = @transform_3, window_bounds = array<i64: 16, 128>}, {pipeline_mode = #tpu.pipeline_mode<synchronous>, transform_indices = @transform_4, window_bounds = array<i64: 1, 78>}, {transform_indices = @transform_5, window_bounds = array<i64: 8, 128>}]} {
    %c0 = arith.constant 0 : index
    %c0_0 = arith.constant 0 : index
    %c0_1 = arith.constant 0 : index
    %0 = vector.load %arg1[%c0, %c0_0, %c0_1] : memref<8x8x4xf32, #tpu.memory_space<vmem>>, vector<8x8x4xf32>
    %c0_2 = arith.constant 0 : index
    %c0_3 = arith.constant 0 : index
    %1 = vector.load %arg2[%c0_2, %c0_3] : memref<16x192xf32, #tpu.memory_space<vmem>>, vector<16x192xf32>
    %c0_4 = arith.constant 0 : index
    %c0_5 = arith.constant 0 : index
    %2 = vector.load %arg3[%c0_4, %c0_5] : memref<4x64xf32, #tpu.memory_space<vmem>>, vector<4x64xf32>
    %c0_6 = arith.constant 0 : index
    %c0_7 = arith.constant 0 : index
    %3 = vector.load %arg4[%c0_6, %c0_7] : memref<16x128xf32, #tpu.memory_space<vmem>>, vector<16x128xf32>
    %c0_8 = arith.constant 0 : index
    %c0_9 = arith.constant 0 : index
    %4 = vector.load %arg5[%c0_8, %c0_9] : memref<1x78xf32, #tpu.memory_space<vmem>>, vector<1x78xf32>
    %5 = vector.extract_strided_slice %4 {offsets = [0, 0], sizes = [1, 3], strides = [1, 1]} : vector<1x78xf32> to vector<1x3xf32>
    %6 = vector.shape_cast %5 : vector<1x3xf32> to vector<1x3xf32>
    %7 = vector.broadcast %6 : vector<1x3xf32> to vector<8x3xf32>
    %8 = vector.extract_strided_slice %4 {offsets = [0, 3], sizes = [1, 4], strides = [1, 1]} : vector<1x78xf32> to vector<1x4xf32>
    %9 = vector.shape_cast %8 : vector<1x4xf32> to vector<1x4xf32>
    %10 = vector.broadcast %9 : vector<1x4xf32> to vector<8x4xf32>
    %11 = vector.extract_strided_slice %4 {offsets = [0, 14], sizes = [1, 16], strides = [1, 1]} : vector<1x78xf32> to vector<1x16xf32>
    %12 = vector.shape_cast %11 : vector<1x16xf32> to vector<1x16xf32>
    %13 = vector.broadcast %12 : vector<1x16xf32> to vector<8x16xf32>
    %14 = vector.extract_strided_slice %4 {offsets = [0, 30], sizes = [1, 16], strides = [1, 1]} : vector<1x78xf32> to vector<1x16xf32>
    %15 = vector.shape_cast %14 : vector<1x16xf32> to vector<1x16xf32>
    %16 = vector.broadcast %15 : vector<1x16xf32> to vector<8x16xf32>
    %17 = vector.extract_strided_slice %4 {offsets = [0, 46], sizes = [1, 16], strides = [1, 1]} : vector<1x78xf32> to vector<1x16xf32>
    %18 = vector.shape_cast %17 : vector<1x16xf32> to vector<1x16xf32>
    %19 = vector.broadcast %18 : vector<1x16xf32> to vector<8x16xf32>
    %20 = vector.extract_strided_slice %4 {offsets = [0, 62], sizes = [1, 16], strides = [1, 1]} : vector<1x78xf32> to vector<1x16xf32>
    %21 = vector.shape_cast %20 : vector<1x16xf32> to vector<1x16xf32>
    %22 = vector.broadcast %21 : vector<1x16xf32> to vector<8x16xf32>
    %23 = vector.extract_strided_slice %4 {offsets = [0, 7], sizes = [1, 4], strides = [1, 1]} : vector<1x78xf32> to vector<1x4xf32>
    %24 = vector.shape_cast %23 : vector<1x4xf32> to vector<1x1x4xf32>
    %25 = vector.broadcast %24 : vector<1x1x4xf32> to vector<8x8x4xf32>
    %26 = arith.mulf %0, %25 : vector<8x8x4xf32>
    %cst = arith.constant dense<0.000000e+00> : vector<8x8xf32>
    %27 = vector.multi_reduction <add>, %26, %cst [2] : vector<8x8x4xf32> to vector<8x8xf32>
    %cst_10 = arith.constant 0.000000e+00 : f32
    %28 = vector.broadcast %cst_10 : f32 to vector<8x2xf32>
    %29 = tpu.concatenate %28, %27 in 1 : vector<8x2xf32>, vector<8x8xf32> -> vector<8x10xf32>
    %cst_11 = arith.constant 0.000000e+00 : f32
    %30 = vector.broadcast %cst_11 : f32 to vector<8x8x4xf32>
    %31 = vector.extract_strided_slice %4 {offsets = [0, 13], sizes = [1, 1], strides = [1, 1]} : vector<1x78xf32> to vector<1x1xf32>
    %32 = vector.shape_cast %31 : vector<1x1xf32> to vector<1x1x1xf32>
    %33 = vector.shape_cast %32 : vector<1x1x1xf32> to vector<1x1x1xf32>
    %34 = vector.broadcast %33 : vector<1x1x1xf32> to vector<8x8x4xf32>
    %35 = arith.mulf %34, %0 : vector<8x8x4xf32>
    %36 = arith.addf %30, %35 : vector<8x8x4xf32>
    %37 = vector.extract_strided_slice %4 {offsets = [0, 12], sizes = [1, 1], strides = [1, 1]} : vector<1x78xf32> to vector<1x1xf32>
    %38 = vector.shape_cast %37 : vector<1x1xf32> to vector<1x1x1xf32>
    %39 = vector.shape_cast %38 : vector<1x1x1xf32> to vector<1x1x1xf32>
    %40 = vector.broadcast %39 : vector<1x1x1xf32> to vector<8x8x4xf32>
    %cst_12 = arith.constant 0.000000e+00 : f32
    %41 = vector.broadcast %cst_12 : f32 to vector<8x1x4xf32>
    %42 = vector.extract_strided_slice %0 {offsets = [0, 0, 0], sizes = [8, 7, 4], strides = [1, 1, 1]} : vector<8x8x4xf32> to vector<8x7x4xf32>
    %43 = tpu.concatenate %41, %42 in 1 : vector<8x1x4xf32>, vector<8x7x4xf32> -> vector<8x8x4xf32>
    %44 = arith.mulf %40, %43 : vector<8x8x4xf32>
    %45 = arith.addf %36, %44 : vector<8x8x4xf32>
    %46 = vector.extract_strided_slice %4 {offsets = [0, 11], sizes = [1, 1], strides = [1, 1]} : vector<1x78xf32> to vector<1x1xf32>
    %47 = vector.shape_cast %46 : vector<1x1xf32> to vector<1x1x1xf32>
    %48 = vector.shape_cast %47 : vector<1x1x1xf32> to vector<1x1x1xf32>
    %49 = vector.broadcast %48 : vector<1x1x1xf32> to vector<8x8x4xf32>
    %cst_13 = arith.constant 0.000000e+00 : f32
    %50 = vector.broadcast %cst_13 : f32 to vector<8x2x4xf32>
    %51 = vector.extract_strided_slice %0 {offsets = [0, 0, 0], sizes = [8, 6, 4], strides = [1, 1, 1]} : vector<8x8x4xf32> to vector<8x6x4xf32>
    %52 = tpu.concatenate %50, %51 in 1 : vector<8x2x4xf32>, vector<8x6x4xf32> -> vector<8x8x4xf32>
    %53 = arith.mulf %49, %52 : vector<8x8x4xf32>
    %54 = arith.addf %45, %53 : vector<8x8x4xf32>
    %cst_14 = arith.constant 0.000000e+00 : f32
    %55 = vector.broadcast %cst_14 : f32 to vector<8x16xf32>
    %cst_15 = arith.constant 0.000000e+00 : f32
    %56 = vector.broadcast %cst_15 : f32 to vector<8x16xf32>
    %cst_16 = arith.constant 0.000000e+00 : f32
    %57 = vector.broadcast %cst_16 : f32 to vector<8x16xf32>
    %cst_17 = arith.constant dense<0.000000e+00> : vector<8x192xf32>
    %58 = tpu.matmul %55, %1, %cst_17 {dimension_numbers = #tpu.dot_dimension_numbers<[1], [0], [0], [1], [0, 0, 1, 1], [], []>} : vector<8x16xf32>, vector<16x192xf32>, vector<8x192xf32> -> vector<8x192xf32>
    %59 = vector.extract_strided_slice %58 {offsets = [0, 0], sizes = [8, 3], strides = [1, 1]} : vector<8x192xf32> to vector<8x3xf32>
    %60 = vector.extract_strided_slice %29 {offsets = [0, 0], sizes = [8, 3], strides = [1, 1]} : vector<8x10xf32> to vector<8x3xf32>
    %61 = arith.addf %59, %60 : vector<8x3xf32>
    %62 = arith.addf %61, %7 : vector<8x3xf32>
    %63 = math.tanh %62 : vector<8x3xf32>
    %64 = math.exp %63 : vector<8x3xf32>
    %cst_18 = arith.constant dense<0.000000e+00> : vector<8xf32>
    %65 = vector.multi_reduction <add>, %64, %cst_18 [1] : vector<8x3xf32> to vector<8xf32>
    %66 = vector.shape_cast %65 : vector<8xf32> to vector<8x1xf32>
    %67 = vector.broadcast %66 : vector<8x1xf32> to vector<8x3xf32>
    %68 = arith.divf %64, %67 : vector<8x3xf32>
    %69 = vector.extract_strided_slice %58 {offsets = [0, 3], sizes = [8, 4], strides = [1, 1]} : vector<8x192xf32> to vector<8x4xf32>
    %70 = vector.extract_strided_slice %54 {offsets = [0, 0, 0], sizes = [8, 1, 4], strides = [1, 1, 1]} : vector<8x8x4xf32> to vector<8x1x4xf32>
    %71 = vector.shape_cast %70 : vector<8x1x4xf32> to vector<8x4xf32>
    %72 = arith.addf %69, %71 : vector<8x4xf32>
    %73 = arith.addf %72, %10 : vector<8x4xf32>
    %74 = math.tanh %73 : vector<8x4xf32>
    %75 = math.exp %74 : vector<8x4xf32>
    %cst_19 = arith.constant dense<0.000000e+00> : vector<8xf32>
    %76 = vector.multi_reduction <add>, %75, %cst_19 [1] : vector<8x4xf32> to vector<8xf32>
    %77 = vector.shape_cast %76 : vector<8xf32> to vector<8x1xf32>
    %78 = vector.broadcast %77 : vector<8x1xf32> to vector<8x4xf32>
    %79 = arith.divf %75, %78 : vector<8x4xf32>
    %cst_20 = arith.constant 0.000000e+00 : f32
    %80 = vector.broadcast %cst_20 : f32 to vector<8x4xf32>
    %81 = vector.extract_strided_slice %68 {offsets = [0, 2], sizes = [8, 1], strides = [1, 1]} : vector<8x3xf32> to vector<8x1xf32>
    %82 = vector.extract_strided_slice %0 {offsets = [0, 0, 0], sizes = [8, 1, 4], strides = [1, 1, 1]} : vector<8x8x4xf32> to vector<8x1x4xf32>
    %83 = vector.shape_cast %82 : vector<8x1x4xf32> to vector<8x4xf32>
    %84 = vector.broadcast %81 : vector<8x1xf32> to vector<8x4xf32>
    %85 = arith.mulf %84, %83 : vector<8x4xf32>
    %86 = arith.addf %80, %85 : vector<8x4xf32>
    %87 = arith.mulf %79, %86 : vector<8x4xf32>
    %88 = vector.extract_strided_slice %58 {offsets = [0, 128], sizes = [8, 64], strides = [1, 1]} : vector<8x192xf32> to vector<8x64xf32>
    %cst_21 = arith.constant dense<0.000000e+00> : vector<8x64xf32>
    %89 = tpu.matmul %87, %2, %cst_21 {dimension_numbers = #tpu.dot_dimension_numbers<[1], [0], [0], [1], [0, 0, 1, 1], [], []>} : vector<8x4xf32>, vector<4x64xf32>, vector<8x64xf32> -> vector<8x64xf32>
    %90 = arith.addf %88, %89 : vector<8x64xf32>
    %91 = vector.extract_strided_slice %90 {offsets = [0, 0], sizes = [8, 16], strides = [1, 1]} : vector<8x64xf32> to vector<8x16xf32>
    %92 = arith.addf %91, %13 : vector<8x16xf32>
    %cst_22 = arith.constant 5.000000e-01 : f32
    %93 = vector.broadcast %cst_22 : f32 to vector<8x16xf32>
    %94 = arith.mulf %93, %92 : vector<8x16xf32>
    %95 = math.tanh %94 : vector<8x16xf32>
    %cst_23 = arith.constant 1.000000e+00 : f32
    %96 = vector.broadcast %cst_23 : f32 to vector<8x16xf32>
    %97 = arith.addf %95, %96 : vector<8x16xf32>
    %cst_24 = arith.constant 5.000000e-01 : f32
    %98 = vector.broadcast %cst_24 : f32 to vector<8x16xf32>
    %99 = arith.mulf %98, %97 : vector<8x16xf32>
    %100 = vector.extract_strided_slice %90 {offsets = [0, 16], sizes = [8, 16], strides = [1, 1]} : vector<8x64xf32> to vector<8x16xf32>
    %101 = arith.addf %100, %16 : vector<8x16xf32>
    %cst_25 = arith.constant 5.000000e-01 : f32
    %102 = vector.broadcast %cst_25 : f32 to vector<8x16xf32>
    %103 = arith.mulf %102, %101 : vector<8x16xf32>
    %104 = math.tanh %103 : vector<8x16xf32>
    %cst_26 = arith.constant 1.000000e+00 : f32
    %105 = vector.broadcast %cst_26 : f32 to vector<8x16xf32>
    %106 = arith.addf %104, %105 : vector<8x16xf32>
    %cst_27 = arith.constant 5.000000e-01 : f32
    %107 = vector.broadcast %cst_27 : f32 to vector<8x16xf32>
    %108 = arith.mulf %107, %106 : vector<8x16xf32>
    %109 = vector.extract_strided_slice %90 {offsets = [0, 32], sizes = [8, 16], strides = [1, 1]} : vector<8x64xf32> to vector<8x16xf32>
    %110 = arith.addf %109, %19 : vector<8x16xf32>
    %111 = math.tanh %110 : vector<8x16xf32>
    %112 = vector.extract_strided_slice %90 {offsets = [0, 48], sizes = [8, 16], strides = [1, 1]} : vector<8x64xf32> to vector<8x16xf32>
    %113 = arith.addf %112, %22 : vector<8x16xf32>
    %cst_28 = arith.constant 5.000000e-01 : f32
    %114 = vector.broadcast %cst_28 : f32 to vector<8x16xf32>
    %115 = arith.mulf %114, %113 : vector<8x16xf32>
    %116 = math.tanh %115 : vector<8x16xf32>
    %cst_29 = arith.constant 1.000000e+00 : f32
    %117 = vector.broadcast %cst_29 : f32 to vector<8x16xf32>
    %118 = arith.addf %116, %117 : vector<8x16xf32>
    %cst_30 = arith.constant 5.000000e-01 : f32
    %119 = vector.broadcast %cst_30 : f32 to vector<8x16xf32>
    %120 = arith.mulf %119, %118 : vector<8x16xf32>
    %121 = arith.mulf %108, %56 : vector<8x16xf32>
    %122 = arith.mulf %99, %111 : vector<8x16xf32>
    %123 = arith.addf %121, %122 : vector<8x16xf32>
    %124 = math.tanh %123 : vector<8x16xf32>
    %125 = arith.mulf %120, %124 : vector<8x16xf32>
    %126 = arith.addf %57, %125 : vector<8x16xf32>
    %cst_31 = arith.constant dense<0.000000e+00> : vector<8x192xf32>
    %127 = tpu.matmul %125, %1, %cst_31 {dimension_numbers = #tpu.dot_dimension_numbers<[1], [0], [0], [1], [0, 0, 1, 1], [], []>} : vector<8x16xf32>, vector<16x192xf32>, vector<8x192xf32> -> vector<8x192xf32>
    %128 = vector.extract_strided_slice %127 {offsets = [0, 0], sizes = [8, 3], strides = [1, 1]} : vector<8x192xf32> to vector<8x3xf32>
    %129 = vector.extract_strided_slice %29 {offsets = [0, 1], sizes = [8, 3], strides = [1, 1]} : vector<8x10xf32> to vector<8x3xf32>
    %130 = arith.addf %128, %129 : vector<8x3xf32>
    %131 = arith.addf %130, %7 : vector<8x3xf32>
    %132 = math.tanh %131 : vector<8x3xf32>
    %133 = math.exp %132 : vector<8x3xf32>
    %cst_32 = arith.constant dense<0.000000e+00> : vector<8xf32>
    %134 = vector.multi_reduction <add>, %133, %cst_32 [1] : vector<8x3xf32> to vector<8xf32>
    %135 = vector.shape_cast %134 : vector<8xf32> to vector<8x1xf32>
    %136 = vector.broadcast %135 : vector<8x1xf32> to vector<8x3xf32>
    %137 = arith.divf %133, %136 : vector<8x3xf32>
    %138 = vector.extract_strided_slice %127 {offsets = [0, 3], sizes = [8, 4], strides = [1, 1]} : vector<8x192xf32> to vector<8x4xf32>
    %139 = vector.extract_strided_slice %54 {offsets = [0, 1, 0], sizes = [8, 1, 4], strides = [1, 1, 1]} : vector<8x8x4xf32> to vector<8x1x4xf32>
    %140 = vector.shape_cast %139 : vector<8x1x4xf32> to vector<8x4xf32>
    %141 = arith.addf %138, %140 : vector<8x4xf32>
    %142 = arith.addf %141, %10 : vector<8x4xf32>
    %143 = math.tanh %142 : vector<8x4xf32>
    %144 = math.exp %143 : vector<8x4xf32>
    %cst_33 = arith.constant dense<0.000000e+00> : vector<8xf32>
    %145 = vector.multi_reduction <add>, %144, %cst_33 [1] : vector<8x4xf32> to vector<8xf32>
    %146 = vector.shape_cast %145 : vector<8xf32> to vector<8x1xf32>
    %147 = vector.broadcast %146 : vector<8x1xf32> to vector<8x4xf32>
    %148 = arith.divf %144, %147 : vector<8x4xf32>
    %cst_34 = arith.constant 0.000000e+00 : f32
    %149 = vector.broadcast %cst_34 : f32 to vector<8x4xf32>
    %150 = vector.extract_strided_slice %137 {offsets = [0, 1], sizes = [8, 1], strides = [1, 1]} : vector<8x3xf32> to vector<8x1xf32>
    %151 = vector.extract_strided_slice %0 {offsets = [0, 0, 0], sizes = [8, 1, 4], strides = [1, 1, 1]} : vector<8x8x4xf32> to vector<8x1x4xf32>
    %152 = vector.shape_cast %151 : vector<8x1x4xf32> to vector<8x4xf32>
    %153 = vector.broadcast %150 : vector<8x1xf32> to vector<8x4xf32>
    %154 = arith.mulf %153, %152 : vector<8x4xf32>
    %155 = arith.addf %149, %154 : vector<8x4xf32>
    %156 = vector.extract_strided_slice %137 {offsets = [0, 2], sizes = [8, 1], strides = [1, 1]} : vector<8x3xf32> to vector<8x1xf32>
    %157 = vector.extract_strided_slice %0 {offsets = [0, 1, 0], sizes = [8, 1, 4], strides = [1, 1, 1]} : vector<8x8x4xf32> to vector<8x1x4xf32>
    %158 = vector.shape_cast %157 : vector<8x1x4xf32> to vector<8x4xf32>
    %159 = vector.broadcast %156 : vector<8x1xf32> to vector<8x4xf32>
    %160 = arith.mulf %159, %158 : vector<8x4xf32>
    %161 = arith.addf %155, %160 : vector<8x4xf32>
    %162 = arith.mulf %148, %161 : vector<8x4xf32>
    %163 = vector.extract_strided_slice %127 {offsets = [0, 128], sizes = [8, 64], strides = [1, 1]} : vector<8x192xf32> to vector<8x64xf32>
    %cst_35 = arith.constant dense<0.000000e+00> : vector<8x64xf32>
    %164 = tpu.matmul %162, %2, %cst_35 {dimension_numbers = #tpu.dot_dimension_numbers<[1], [0], [0], [1], [0, 0, 1, 1], [], []>} : vector<8x4xf32>, vector<4x64xf32>, vector<8x64xf32> -> vector<8x64xf32>
    %165 = arith.addf %163, %164 : vector<8x64xf32>
    %166 = vector.extract_strided_slice %165 {offsets = [0, 0], sizes = [8, 16], strides = [1, 1]} : vector<8x64xf32> to vector<8x16xf32>
    %167 = arith.addf %166, %13 : vector<8x16xf32>
    %cst_36 = arith.constant 5.000000e-01 : f32
    %168 = vector.broadcast %cst_36 : f32 to vector<8x16xf32>
    %169 = arith.mulf %168, %167 : vector<8x16xf32>
    %170 = math.tanh %169 : vector<8x16xf32>
    %cst_37 = arith.constant 1.000000e+00 : f32
    %171 = vector.broadcast %cst_37 : f32 to vector<8x16xf32>
    %172 = arith.addf %170, %171 : vector<8x16xf32>
    %cst_38 = arith.constant 5.000000e-01 : f32
    %173 = vector.broadcast %cst_38 : f32 to vector<8x16xf32>
    %174 = arith.mulf %173, %172 : vector<8x16xf32>
    %175 = vector.extract_strided_slice %165 {offsets = [0, 16], sizes = [8, 16], strides = [1, 1]} : vector<8x64xf32> to vector<8x16xf32>
    %176 = arith.addf %175, %16 : vector<8x16xf32>
    %cst_39 = arith.constant 5.000000e-01 : f32
    %177 = vector.broadcast %cst_39 : f32 to vector<8x16xf32>
    %178 = arith.mulf %177, %176 : vector<8x16xf32>
    %179 = math.tanh %178 : vector<8x16xf32>
    %cst_40 = arith.constant 1.000000e+00 : f32
    %180 = vector.broadcast %cst_40 : f32 to vector<8x16xf32>
    %181 = arith.addf %179, %180 : vector<8x16xf32>
    %cst_41 = arith.constant 5.000000e-01 : f32
    %182 = vector.broadcast %cst_41 : f32 to vector<8x16xf32>
    %183 = arith.mulf %182, %181 : vector<8x16xf32>
    %184 = vector.extract_strided_slice %165 {offsets = [0, 32], sizes = [8, 16], strides = [1, 1]} : vector<8x64xf32> to vector<8x16xf32>
    %185 = arith.addf %184, %19 : vector<8x16xf32>
    %186 = math.tanh %185 : vector<8x16xf32>
    %187 = vector.extract_strided_slice %165 {offsets = [0, 48], sizes = [8, 16], strides = [1, 1]} : vector<8x64xf32> to vector<8x16xf32>
    %188 = arith.addf %187, %22 : vector<8x16xf32>
    %cst_42 = arith.constant 5.000000e-01 : f32
    %189 = vector.broadcast %cst_42 : f32 to vector<8x16xf32>
    %190 = arith.mulf %189, %188 : vector<8x16xf32>
    %191 = math.tanh %190 : vector<8x16xf32>
    %cst_43 = arith.constant 1.000000e+00 : f32
    %192 = vector.broadcast %cst_43 : f32 to vector<8x16xf32>
    %193 = arith.addf %191, %192 : vector<8x16xf32>
    %cst_44 = arith.constant 5.000000e-01 : f32
    %194 = vector.broadcast %cst_44 : f32 to vector<8x16xf32>
    %195 = arith.mulf %194, %193 : vector<8x16xf32>
    %196 = arith.mulf %183, %123 : vector<8x16xf32>
    %197 = arith.mulf %174, %186 : vector<8x16xf32>
    %198 = arith.addf %196, %197 : vector<8x16xf32>
    %199 = math.tanh %198 : vector<8x16xf32>
    %200 = arith.mulf %195, %199 : vector<8x16xf32>
    %201 = arith.addf %126, %200 : vector<8x16xf32>
    %cst_45 = arith.constant dense<0.000000e+00> : vector<8x192xf32>
    %202 = tpu.matmul %200, %1, %cst_45 {dimension_numbers = #tpu.dot_dimension_numbers<[1], [0], [0], [1], [0, 0, 1, 1], [], []>} : vector<8x16xf32>, vector<16x192xf32>, vector<8x192xf32> -> vector<8x192xf32>
    %203 = vector.extract_strided_slice %202 {offsets = [0, 0], sizes = [8, 3], strides = [1, 1]} : vector<8x192xf32> to vector<8x3xf32>
    %204 = vector.extract_strided_slice %29 {offsets = [0, 2], sizes = [8, 3], strides = [1, 1]} : vector<8x10xf32> to vector<8x3xf32>
    %205 = arith.addf %203, %204 : vector<8x3xf32>
    %206 = arith.addf %205, %7 : vector<8x3xf32>
    %207 = math.tanh %206 : vector<8x3xf32>
    %208 = math.exp %207 : vector<8x3xf32>
    %cst_46 = arith.constant dense<0.000000e+00> : vector<8xf32>
    %209 = vector.multi_reduction <add>, %208, %cst_46 [1] : vector<8x3xf32> to vector<8xf32>
    %210 = vector.shape_cast %209 : vector<8xf32> to vector<8x1xf32>
    %211 = vector.broadcast %210 : vector<8x1xf32> to vector<8x3xf32>
    %212 = arith.divf %208, %211 : vector<8x3xf32>
    %213 = vector.extract_strided_slice %202 {offsets = [0, 3], sizes = [8, 4], strides = [1, 1]} : vector<8x192xf32> to vector<8x4xf32>
    %214 = vector.extract_strided_slice %54 {offsets = [0, 2, 0], sizes = [8, 1, 4], strides = [1, 1, 1]} : vector<8x8x4xf32> to vector<8x1x4xf32>
    %215 = vector.shape_cast %214 : vector<8x1x4xf32> to vector<8x4xf32>
    %216 = arith.addf %213, %215 : vector<8x4xf32>
    %217 = arith.addf %216, %10 : vector<8x4xf32>
    %218 = math.tanh %217 : vector<8x4xf32>
    %219 = math.exp %218 : vector<8x4xf32>
    %cst_47 = arith.constant dense<0.000000e+00> : vector<8xf32>
    %220 = vector.multi_reduction <add>, %219, %cst_47 [1] : vector<8x4xf32> to vector<8xf32>
    %221 = vector.shape_cast %220 : vector<8xf32> to vector<8x1xf32>
    %222 = vector.broadcast %221 : vector<8x1xf32> to vector<8x4xf32>
    %223 = arith.divf %219, %222 : vector<8x4xf32>
    %cst_48 = arith.constant 0.000000e+00 : f32
    %224 = vector.broadcast %cst_48 : f32 to vector<8x4xf32>
    %225 = vector.extract_strided_slice %212 {offsets = [0, 0], sizes = [8, 1], strides = [1, 1]} : vector<8x3xf32> to vector<8x1xf32>
    %226 = vector.extract_strided_slice %0 {offsets = [0, 0, 0], sizes = [8, 1, 4], strides = [1, 1, 1]} : vector<8x8x4xf32> to vector<8x1x4xf32>
    %227 = vector.shape_cast %226 : vector<8x1x4xf32> to vector<8x4xf32>
    %228 = vector.broadcast %225 : vector<8x1xf32> to vector<8x4xf32>
    %229 = arith.mulf %228, %227 : vector<8x4xf32>
    %230 = arith.addf %224, %229 : vector<8x4xf32>
    %231 = vector.extract_strided_slice %212 {offsets = [0, 1], sizes = [8, 1], strides = [1, 1]} : vector<8x3xf32> to vector<8x1xf32>
    %232 = vector.extract_strided_slice %0 {offsets = [0, 1, 0], sizes = [8, 1, 4], strides = [1, 1, 1]} : vector<8x8x4xf32> to vector<8x1x4xf32>
    %233 = vector.shape_cast %232 : vector<8x1x4xf32> to vector<8x4xf32>
    %234 = vector.broadcast %231 : vector<8x1xf32> to vector<8x4xf32>
    %235 = arith.mulf %234, %233 : vector<8x4xf32>
    %236 = arith.addf %230, %235 : vector<8x4xf32>
    %237 = vector.extract_strided_slice %212 {offsets = [0, 2], sizes = [8, 1], strides = [1, 1]} : vector<8x3xf32> to vector<8x1xf32>
    %238 = vector.extract_strided_slice %0 {offsets = [0, 2, 0], sizes = [8, 1, 4], strides = [1, 1, 1]} : vector<8x8x4xf32> to vector<8x1x4xf32>
    %239 = vector.shape_cast %238 : vector<8x1x4xf32> to vector<8x4xf32>
    %240 = vector.broadcast %237 : vector<8x1xf32> to vector<8x4xf32>
    %241 = arith.mulf %240, %239 : vector<8x4xf32>
    %242 = arith.addf %236, %241 : vector<8x4xf32>
    %243 = arith.mulf %223, %242 : vector<8x4xf32>
    %244 = vector.extract_strided_slice %202 {offsets = [0, 128], sizes = [8, 64], strides = [1, 1]} : vector<8x192xf32> to vector<8x64xf32>
    %cst_49 = arith.constant dense<0.000000e+00> : vector<8x64xf32>
    %245 = tpu.matmul %243, %2, %cst_49 {dimension_numbers = #tpu.dot_dimension_numbers<[1], [0], [0], [1], [0, 0, 1, 1], [], []>} : vector<8x4xf32>, vector<4x64xf32>, vector<8x64xf32> -> vector<8x64xf32>
    %246 = arith.addf %244, %245 : vector<8x64xf32>
    %247 = vector.extract_strided_slice %246 {offsets = [0, 0], sizes = [8, 16], strides = [1, 1]} : vector<8x64xf32> to vector<8x16xf32>
    %248 = arith.addf %247, %13 : vector<8x16xf32>
    %cst_50 = arith.constant 5.000000e-01 : f32
    %249 = vector.broadcast %cst_50 : f32 to vector<8x16xf32>
    %250 = arith.mulf %249, %248 : vector<8x16xf32>
    %251 = math.tanh %250 : vector<8x16xf32>
    %cst_51 = arith.constant 1.000000e+00 : f32
    %252 = vector.broadcast %cst_51 : f32 to vector<8x16xf32>
    %253 = arith.addf %251, %252 : vector<8x16xf32>
    %cst_52 = arith.constant 5.000000e-01 : f32
    %254 = vector.broadcast %cst_52 : f32 to vector<8x16xf32>
    %255 = arith.mulf %254, %253 : vector<8x16xf32>
    %256 = vector.extract_strided_slice %246 {offsets = [0, 16], sizes = [8, 16], strides = [1, 1]} : vector<8x64xf32> to vector<8x16xf32>
    %257 = arith.addf %256, %16 : vector<8x16xf32>
    %cst_53 = arith.constant 5.000000e-01 : f32
    %258 = vector.broadcast %cst_53 : f32 to vector<8x16xf32>
    %259 = arith.mulf %258, %257 : vector<8x16xf32>
    %260 = math.tanh %259 : vector<8x16xf32>
    %cst_54 = arith.constant 1.000000e+00 : f32
    %261 = vector.broadcast %cst_54 : f32 to vector<8x16xf32>
    %262 = arith.addf %260, %261 : vector<8x16xf32>
    %cst_55 = arith.constant 5.000000e-01 : f32
    %263 = vector.broadcast %cst_55 : f32 to vector<8x16xf32>
    %264 = arith.mulf %263, %262 : vector<8x16xf32>
    %265 = vector.extract_strided_slice %246 {offsets = [0, 32], sizes = [8, 16], strides = [1, 1]} : vector<8x64xf32> to vector<8x16xf32>
    %266 = arith.addf %265, %19 : vector<8x16xf32>
    %267 = math.tanh %266 : vector<8x16xf32>
    %268 = vector.extract_strided_slice %246 {offsets = [0, 48], sizes = [8, 16], strides = [1, 1]} : vector<8x64xf32> to vector<8x16xf32>
    %269 = arith.addf %268, %22 : vector<8x16xf32>
    %cst_56 = arith.constant 5.000000e-01 : f32
    %270 = vector.broadcast %cst_56 : f32 to vector<8x16xf32>
    %271 = arith.mulf %270, %269 : vector<8x16xf32>
    %272 = math.tanh %271 : vector<8x16xf32>
    %cst_57 = arith.constant 1.000000e+00 : f32
    %273 = vector.broadcast %cst_57 : f32 to vector<8x16xf32>
    %274 = arith.addf %272, %273 : vector<8x16xf32>
    %cst_58 = arith.constant 5.000000e-01 : f32
    %275 = vector.broadcast %cst_58 : f32 to vector<8x16xf32>
    %276 = arith.mulf %275, %274 : vector<8x16xf32>
    %277 = arith.mulf %264, %198 : vector<8x16xf32>
    %278 = arith.mulf %255, %267 : vector<8x16xf32>
    %279 = arith.addf %277, %278 : vector<8x16xf32>
    %280 = math.tanh %279 : vector<8x16xf32>
    %281 = arith.mulf %276, %280 : vector<8x16xf32>
    %282 = arith.addf %201, %281 : vector<8x16xf32>
    %cst_59 = arith.constant dense<0.000000e+00> : vector<8x192xf32>
    %283 = tpu.matmul %281, %1, %cst_59 {dimension_numbers = #tpu.dot_dimension_numbers<[1], [0], [0], [1], [0, 0, 1, 1], [], []>} : vector<8x16xf32>, vector<16x192xf32>, vector<8x192xf32> -> vector<8x192xf32>
    %284 = vector.extract_strided_slice %283 {offsets = [0, 0], sizes = [8, 3], strides = [1, 1]} : vector<8x192xf32> to vector<8x3xf32>
    %285 = vector.extract_strided_slice %29 {offsets = [0, 3], sizes = [8, 3], strides = [1, 1]} : vector<8x10xf32> to vector<8x3xf32>
    %286 = arith.addf %284, %285 : vector<8x3xf32>
    %287 = arith.addf %286, %7 : vector<8x3xf32>
    %288 = math.tanh %287 : vector<8x3xf32>
    %289 = math.exp %288 : vector<8x3xf32>
    %cst_60 = arith.constant dense<0.000000e+00> : vector<8xf32>
    %290 = vector.multi_reduction <add>, %289, %cst_60 [1] : vector<8x3xf32> to vector<8xf32>
    %291 = vector.shape_cast %290 : vector<8xf32> to vector<8x1xf32>
    %292 = vector.broadcast %291 : vector<8x1xf32> to vector<8x3xf32>
    %293 = arith.divf %289, %292 : vector<8x3xf32>
    %294 = vector.extract_strided_slice %283 {offsets = [0, 3], sizes = [8, 4], strides = [1, 1]} : vector<8x192xf32> to vector<8x4xf32>
    %295 = vector.extract_strided_slice %54 {offsets = [0, 3, 0], sizes = [8, 1, 4], strides = [1, 1, 1]} : vector<8x8x4xf32> to vector<8x1x4xf32>
    %296 = vector.shape_cast %295 : vector<8x1x4xf32> to vector<8x4xf32>
    %297 = arith.addf %294, %296 : vector<8x4xf32>
    %298 = arith.addf %297, %10 : vector<8x4xf32>
    %299 = math.tanh %298 : vector<8x4xf32>
    %300 = math.exp %299 : vector<8x4xf32>
    %cst_61 = arith.constant dense<0.000000e+00> : vector<8xf32>
    %301 = vector.multi_reduction <add>, %300, %cst_61 [1] : vector<8x4xf32> to vector<8xf32>
    %302 = vector.shape_cast %301 : vector<8xf32> to vector<8x1xf32>
    %303 = vector.broadcast %302 : vector<8x1xf32> to vector<8x4xf32>
    %304 = arith.divf %300, %303 : vector<8x4xf32>
    %cst_62 = arith.constant 0.000000e+00 : f32
    %305 = vector.broadcast %cst_62 : f32 to vector<8x4xf32>
    %306 = vector.extract_strided_slice %293 {offsets = [0, 0], sizes = [8, 1], strides = [1, 1]} : vector<8x3xf32> to vector<8x1xf32>
    %307 = vector.extract_strided_slice %0 {offsets = [0, 1, 0], sizes = [8, 1, 4], strides = [1, 1, 1]} : vector<8x8x4xf32> to vector<8x1x4xf32>
    %308 = vector.shape_cast %307 : vector<8x1x4xf32> to vector<8x4xf32>
    %309 = vector.broadcast %306 : vector<8x1xf32> to vector<8x4xf32>
    %310 = arith.mulf %309, %308 : vector<8x4xf32>
    %311 = arith.addf %305, %310 : vector<8x4xf32>
    %312 = vector.extract_strided_slice %293 {offsets = [0, 1], sizes = [8, 1], strides = [1, 1]} : vector<8x3xf32> to vector<8x1xf32>
    %313 = vector.extract_strided_slice %0 {offsets = [0, 2, 0], sizes = [8, 1, 4], strides = [1, 1, 1]} : vector<8x8x4xf32> to vector<8x1x4xf32>
    %314 = vector.shape_cast %313 : vector<8x1x4xf32> to vector<8x4xf32>
    %315 = vector.broadcast %312 : vector<8x1xf32> to vector<8x4xf32>
    %316 = arith.mulf %315, %314 : vector<8x4xf32>
    %317 = arith.addf %311, %316 : vector<8x4xf32>
    %318 = vector.extract_strided_slice %293 {offsets = [0, 2], sizes = [8, 1], strides = [1, 1]} : vector<8x3xf32> to vector<8x1xf32>
    %319 = vector.extract_strided_slice %0 {offsets = [0, 3, 0], sizes = [8, 1, 4], strides = [1, 1, 1]} : vector<8x8x4xf32> to vector<8x1x4xf32>
    %320 = vector.shape_cast %319 : vector<8x1x4xf32> to vector<8x4xf32>
    %321 = vector.broadcast %318 : vector<8x1xf32> to vector<8x4xf32>
    %322 = arith.mulf %321, %320 : vector<8x4xf32>
    %323 = arith.addf %317, %322 : vector<8x4xf32>
    %324 = arith.mulf %304, %323 : vector<8x4xf32>
    %325 = vector.extract_strided_slice %283 {offsets = [0, 128], sizes = [8, 64], strides = [1, 1]} : vector<8x192xf32> to vector<8x64xf32>
    %cst_63 = arith.constant dense<0.000000e+00> : vector<8x64xf32>
    %326 = tpu.matmul %324, %2, %cst_63 {dimension_numbers = #tpu.dot_dimension_numbers<[1], [0], [0], [1], [0, 0, 1, 1], [], []>} : vector<8x4xf32>, vector<4x64xf32>, vector<8x64xf32> -> vector<8x64xf32>
    %327 = arith.addf %325, %326 : vector<8x64xf32>
    %328 = vector.extract_strided_slice %327 {offsets = [0, 0], sizes = [8, 16], strides = [1, 1]} : vector<8x64xf32> to vector<8x16xf32>
    %329 = arith.addf %328, %13 : vector<8x16xf32>
    %cst_64 = arith.constant 5.000000e-01 : f32
    %330 = vector.broadcast %cst_64 : f32 to vector<8x16xf32>
    %331 = arith.mulf %330, %329 : vector<8x16xf32>
    %332 = math.tanh %331 : vector<8x16xf32>
    %cst_65 = arith.constant 1.000000e+00 : f32
    %333 = vector.broadcast %cst_65 : f32 to vector<8x16xf32>
    %334 = arith.addf %332, %333 : vector<8x16xf32>
    %cst_66 = arith.constant 5.000000e-01 : f32
    %335 = vector.broadcast %cst_66 : f32 to vector<8x16xf32>
    %336 = arith.mulf %335, %334 : vector<8x16xf32>
    %337 = vector.extract_strided_slice %327 {offsets = [0, 16], sizes = [8, 16], strides = [1, 1]} : vector<8x64xf32> to vector<8x16xf32>
    %338 = arith.addf %337, %16 : vector<8x16xf32>
    %cst_67 = arith.constant 5.000000e-01 : f32
    %339 = vector.broadcast %cst_67 : f32 to vector<8x16xf32>
    %340 = arith.mulf %339, %338 : vector<8x16xf32>
    %341 = math.tanh %340 : vector<8x16xf32>
    %cst_68 = arith.constant 1.000000e+00 : f32
    %342 = vector.broadcast %cst_68 : f32 to vector<8x16xf32>
    %343 = arith.addf %341, %342 : vector<8x16xf32>
    %cst_69 = arith.constant 5.000000e-01 : f32
    %344 = vector.broadcast %cst_69 : f32 to vector<8x16xf32>
    %345 = arith.mulf %344, %343 : vector<8x16xf32>
    %346 = vector.extract_strided_slice %327 {offsets = [0, 32], sizes = [8, 16], strides = [1, 1]} : vector<8x64xf32> to vector<8x16xf32>
    %347 = arith.addf %346, %19 : vector<8x16xf32>
    %348 = math.tanh %347 : vector<8x16xf32>
    %349 = vector.extract_strided_slice %327 {offsets = [0, 48], sizes = [8, 16], strides = [1, 1]} : vector<8x64xf32> to vector<8x16xf32>
    %350 = arith.addf %349, %22 : vector<8x16xf32>
    %cst_70 = arith.constant 5.000000e-01 : f32
    %351 = vector.broadcast %cst_70 : f32 to vector<8x16xf32>
    %352 = arith.mulf %351, %350 : vector<8x16xf32>
    %353 = math.tanh %352 : vector<8x16xf32>
    %cst_71 = arith.constant 1.000000e+00 : f32
    %354 = vector.broadcast %cst_71 : f32 to vector<8x16xf32>
    %355 = arith.addf %353, %354 : vector<8x16xf32>
    %cst_72 = arith.constant 5.000000e-01 : f32
    %356 = vector.broadcast %cst_72 : f32 to vector<8x16xf32>
    %357 = arith.mulf %356, %355 : vector<8x16xf32>
    %358 = arith.mulf %345, %279 : vector<8x16xf32>
    %359 = arith.mulf %336, %348 : vector<8x16xf32>
    %360 = arith.addf %358, %359 : vector<8x16xf32>
    %361 = math.tanh %360 : vector<8x16xf32>
    %362 = arith.mulf %357, %361 : vector<8x16xf32>
    %363 = arith.addf %282, %362 : vector<8x16xf32>
    %cst_73 = arith.constant dense<0.000000e+00> : vector<8x192xf32>
    %364 = tpu.matmul %362, %1, %cst_73 {dimension_numbers = #tpu.dot_dimension_numbers<[1], [0], [0], [1], [0, 0, 1, 1], [], []>} : vector<8x16xf32>, vector<16x192xf32>, vector<8x192xf32> -> vector<8x192xf32>
    %365 = vector.extract_strided_slice %364 {offsets = [0, 0], sizes = [8, 3], strides = [1, 1]} : vector<8x192xf32> to vector<8x3xf32>
    %366 = vector.extract_strided_slice %29 {offsets = [0, 4], sizes = [8, 3], strides = [1, 1]} : vector<8x10xf32> to vector<8x3xf32>
    %367 = arith.addf %365, %366 : vector<8x3xf32>
    %368 = arith.addf %367, %7 : vector<8x3xf32>
    %369 = math.tanh %368 : vector<8x3xf32>
    %370 = math.exp %369 : vector<8x3xf32>
    %cst_74 = arith.constant dense<0.000000e+00> : vector<8xf32>
    %371 = vector.multi_reduction <add>, %370, %cst_74 [1] : vector<8x3xf32> to vector<8xf32>
    %372 = vector.shape_cast %371 : vector<8xf32> to vector<8x1xf32>
    %373 = vector.broadcast %372 : vector<8x1xf32> to vector<8x3xf32>
    %374 = arith.divf %370, %373 : vector<8x3xf32>
    %375 = vector.extract_strided_slice %364 {offsets = [0, 3], sizes = [8, 4], strides = [1, 1]} : vector<8x192xf32> to vector<8x4xf32>
    %376 = vector.extract_strided_slice %54 {offsets = [0, 4, 0], sizes = [8, 1, 4], strides = [1, 1, 1]} : vector<8x8x4xf32> to vector<8x1x4xf32>
    %377 = vector.shape_cast %376 : vector<8x1x4xf32> to vector<8x4xf32>
    %378 = arith.addf %375, %377 : vector<8x4xf32>
    %379 = arith.addf %378, %10 : vector<8x4xf32>
    %380 = math.tanh %379 : vector<8x4xf32>
    %381 = math.exp %380 : vector<8x4xf32>
    %cst_75 = arith.constant dense<0.000000e+00> : vector<8xf32>
    %382 = vector.multi_reduction <add>, %381, %cst_75 [1] : vector<8x4xf32> to vector<8xf32>
    %383 = vector.shape_cast %382 : vector<8xf32> to vector<8x1xf32>
    %384 = vector.broadcast %383 : vector<8x1xf32> to vector<8x4xf32>
    %385 = arith.divf %381, %384 : vector<8x4xf32>
    %cst_76 = arith.constant 0.000000e+00 : f32
    %386 = vector.broadcast %cst_76 : f32 to vector<8x4xf32>
    %387 = vector.extract_strided_slice %374 {offsets = [0, 0], sizes = [8, 1], strides = [1, 1]} : vector<8x3xf32> to vector<8x1xf32>
    %388 = vector.extract_strided_slice %0 {offsets = [0, 2, 0], sizes = [8, 1, 4], strides = [1, 1, 1]} : vector<8x8x4xf32> to vector<8x1x4xf32>
    %389 = vector.shape_cast %388 : vector<8x1x4xf32> to vector<8x4xf32>
    %390 = vector.broadcast %387 : vector<8x1xf32> to vector<8x4xf32>
    %391 = arith.mulf %390, %389 : vector<8x4xf32>
    %392 = arith.addf %386, %391 : vector<8x4xf32>
    %393 = vector.extract_strided_slice %374 {offsets = [0, 1], sizes = [8, 1], strides = [1, 1]} : vector<8x3xf32> to vector<8x1xf32>
    %394 = vector.extract_strided_slice %0 {offsets = [0, 3, 0], sizes = [8, 1, 4], strides = [1, 1, 1]} : vector<8x8x4xf32> to vector<8x1x4xf32>
    %395 = vector.shape_cast %394 : vector<8x1x4xf32> to vector<8x4xf32>
    %396 = vector.broadcast %393 : vector<8x1xf32> to vector<8x4xf32>
    %397 = arith.mulf %396, %395 : vector<8x4xf32>
    %398 = arith.addf %392, %397 : vector<8x4xf32>
    %399 = vector.extract_strided_slice %374 {offsets = [0, 2], sizes = [8, 1], strides = [1, 1]} : vector<8x3xf32> to vector<8x1xf32>
    %400 = vector.extract_strided_slice %0 {offsets = [0, 4, 0], sizes = [8, 1, 4], strides = [1, 1, 1]} : vector<8x8x4xf32> to vector<8x1x4xf32>
    %401 = vector.shape_cast %400 : vector<8x1x4xf32> to vector<8x4xf32>
    %402 = vector.broadcast %399 : vector<8x1xf32> to vector<8x4xf32>
    %403 = arith.mulf %402, %401 : vector<8x4xf32>
    %404 = arith.addf %398, %403 : vector<8x4xf32>
    %405 = arith.mulf %385, %404 : vector<8x4xf32>
    %406 = vector.extract_strided_slice %364 {offsets = [0, 128], sizes = [8, 64], strides = [1, 1]} : vector<8x192xf32> to vector<8x64xf32>
    %cst_77 = arith.constant dense<0.000000e+00> : vector<8x64xf32>
    %407 = tpu.matmul %405, %2, %cst_77 {dimension_numbers = #tpu.dot_dimension_numbers<[1], [0], [0], [1], [0, 0, 1, 1], [], []>} : vector<8x4xf32>, vector<4x64xf32>, vector<8x64xf32> -> vector<8x64xf32>
    %408 = arith.addf %406, %407 : vector<8x64xf32>
    %409 = vector.extract_strided_slice %408 {offsets = [0, 0], sizes = [8, 16], strides = [1, 1]} : vector<8x64xf32> to vector<8x16xf32>
    %410 = arith.addf %409, %13 : vector<8x16xf32>
    %cst_78 = arith.constant 5.000000e-01 : f32
    %411 = vector.broadcast %cst_78 : f32 to vector<8x16xf32>
    %412 = arith.mulf %411, %410 : vector<8x16xf32>
    %413 = math.tanh %412 : vector<8x16xf32>
    %cst_79 = arith.constant 1.000000e+00 : f32
    %414 = vector.broadcast %cst_79 : f32 to vector<8x16xf32>
    %415 = arith.addf %413, %414 : vector<8x16xf32>
    %cst_80 = arith.constant 5.000000e-01 : f32
    %416 = vector.broadcast %cst_80 : f32 to vector<8x16xf32>
    %417 = arith.mulf %416, %415 : vector<8x16xf32>
    %418 = vector.extract_strided_slice %408 {offsets = [0, 16], sizes = [8, 16], strides = [1, 1]} : vector<8x64xf32> to vector<8x16xf32>
    %419 = arith.addf %418, %16 : vector<8x16xf32>
    %cst_81 = arith.constant 5.000000e-01 : f32
    %420 = vector.broadcast %cst_81 : f32 to vector<8x16xf32>
    %421 = arith.mulf %420, %419 : vector<8x16xf32>
    %422 = math.tanh %421 : vector<8x16xf32>
    %cst_82 = arith.constant 1.000000e+00 : f32
    %423 = vector.broadcast %cst_82 : f32 to vector<8x16xf32>
    %424 = arith.addf %422, %423 : vector<8x16xf32>
    %cst_83 = arith.constant 5.000000e-01 : f32
    %425 = vector.broadcast %cst_83 : f32 to vector<8x16xf32>
    %426 = arith.mulf %425, %424 : vector<8x16xf32>
    %427 = vector.extract_strided_slice %408 {offsets = [0, 32], sizes = [8, 16], strides = [1, 1]} : vector<8x64xf32> to vector<8x16xf32>
    %428 = arith.addf %427, %19 : vector<8x16xf32>
    %429 = math.tanh %428 : vector<8x16xf32>
    %430 = vector.extract_strided_slice %408 {offsets = [0, 48], sizes = [8, 16], strides = [1, 1]} : vector<8x64xf32> to vector<8x16xf32>
    %431 = arith.addf %430, %22 : vector<8x16xf32>
    %cst_84 = arith.constant 5.000000e-01 : f32
    %432 = vector.broadcast %cst_84 : f32 to vector<8x16xf32>
    %433 = arith.mulf %432, %431 : vector<8x16xf32>
    %434 = math.tanh %433 : vector<8x16xf32>
    %cst_85 = arith.constant 1.000000e+00 : f32
    %435 = vector.broadcast %cst_85 : f32 to vector<8x16xf32>
    %436 = arith.addf %434, %435 : vector<8x16xf32>
    %cst_86 = arith.constant 5.000000e-01 : f32
    %437 = vector.broadcast %cst_86 : f32 to vector<8x16xf32>
    %438 = arith.mulf %437, %436 : vector<8x16xf32>
    %439 = arith.mulf %426, %360 : vector<8x16xf32>
    %440 = arith.mulf %417, %429 : vector<8x16xf32>
    %441 = arith.addf %439, %440 : vector<8x16xf32>
    %442 = math.tanh %441 : vector<8x16xf32>
    %443 = arith.mulf %438, %442 : vector<8x16xf32>
    %444 = arith.addf %363, %443 : vector<8x16xf32>
    %cst_87 = arith.constant dense<0.000000e+00> : vector<8x192xf32>
    %445 = tpu.matmul %443, %1, %cst_87 {dimension_numbers = #tpu.dot_dimension_numbers<[1], [0], [0], [1], [0, 0, 1, 1], [], []>} : vector<8x16xf32>, vector<16x192xf32>, vector<8x192xf32> -> vector<8x192xf32>
    %446 = vector.extract_strided_slice %445 {offsets = [0, 0], sizes = [8, 3], strides = [1, 1]} : vector<8x192xf32> to vector<8x3xf32>
    %447 = vector.extract_strided_slice %29 {offsets = [0, 5], sizes = [8, 3], strides = [1, 1]} : vector<8x10xf32> to vector<8x3xf32>
    %448 = arith.addf %446, %447 : vector<8x3xf32>
    %449 = arith.addf %448, %7 : vector<8x3xf32>
    %450 = math.tanh %449 : vector<8x3xf32>
    %451 = math.exp %450 : vector<8x3xf32>
    %cst_88 = arith.constant dense<0.000000e+00> : vector<8xf32>
    %452 = vector.multi_reduction <add>, %451, %cst_88 [1] : vector<8x3xf32> to vector<8xf32>
    %453 = vector.shape_cast %452 : vector<8xf32> to vector<8x1xf32>
    %454 = vector.broadcast %453 : vector<8x1xf32> to vector<8x3xf32>
    %455 = arith.divf %451, %454 : vector<8x3xf32>
    %456 = vector.extract_strided_slice %445 {offsets = [0, 3], sizes = [8, 4], strides = [1, 1]} : vector<8x192xf32> to vector<8x4xf32>
    %457 = vector.extract_strided_slice %54 {offsets = [0, 5, 0], sizes = [8, 1, 4], strides = [1, 1, 1]} : vector<8x8x4xf32> to vector<8x1x4xf32>
    %458 = vector.shape_cast %457 : vector<8x1x4xf32> to vector<8x4xf32>
    %459 = arith.addf %456, %458 : vector<8x4xf32>
    %460 = arith.addf %459, %10 : vector<8x4xf32>
    %461 = math.tanh %460 : vector<8x4xf32>
    %462 = math.exp %461 : vector<8x4xf32>
    %cst_89 = arith.constant dense<0.000000e+00> : vector<8xf32>
    %463 = vector.multi_reduction <add>, %462, %cst_89 [1] : vector<8x4xf32> to vector<8xf32>
    %464 = vector.shape_cast %463 : vector<8xf32> to vector<8x1xf32>
    %465 = vector.broadcast %464 : vector<8x1xf32> to vector<8x4xf32>
    %466 = arith.divf %462, %465 : vector<8x4xf32>
    %cst_90 = arith.constant 0.000000e+00 : f32
    %467 = vector.broadcast %cst_90 : f32 to vector<8x4xf32>
    %468 = vector.extract_strided_slice %455 {offsets = [0, 0], sizes = [8, 1], strides = [1, 1]} : vector<8x3xf32> to vector<8x1xf32>
    %469 = vector.extract_strided_slice %0 {offsets = [0, 3, 0], sizes = [8, 1, 4], strides = [1, 1, 1]} : vector<8x8x4xf32> to vector<8x1x4xf32>
    %470 = vector.shape_cast %469 : vector<8x1x4xf32> to vector<8x4xf32>
    %471 = vector.broadcast %468 : vector<8x1xf32> to vector<8x4xf32>
    %472 = arith.mulf %471, %470 : vector<8x4xf32>
    %473 = arith.addf %467, %472 : vector<8x4xf32>
    %474 = vector.extract_strided_slice %455 {offsets = [0, 1], sizes = [8, 1], strides = [1, 1]} : vector<8x3xf32> to vector<8x1xf32>
    %475 = vector.extract_strided_slice %0 {offsets = [0, 4, 0], sizes = [8, 1, 4], strides = [1, 1, 1]} : vector<8x8x4xf32> to vector<8x1x4xf32>
    %476 = vector.shape_cast %475 : vector<8x1x4xf32> to vector<8x4xf32>
    %477 = vector.broadcast %474 : vector<8x1xf32> to vector<8x4xf32>
    %478 = arith.mulf %477, %476 : vector<8x4xf32>
    %479 = arith.addf %473, %478 : vector<8x4xf32>
    %480 = vector.extract_strided_slice %455 {offsets = [0, 2], sizes = [8, 1], strides = [1, 1]} : vector<8x3xf32> to vector<8x1xf32>
    %481 = vector.extract_strided_slice %0 {offsets = [0, 5, 0], sizes = [8, 1, 4], strides = [1, 1, 1]} : vector<8x8x4xf32> to vector<8x1x4xf32>
    %482 = vector.shape_cast %481 : vector<8x1x4xf32> to vector<8x4xf32>
    %483 = vector.broadcast %480 : vector<8x1xf32> to vector<8x4xf32>
    %484 = arith.mulf %483, %482 : vector<8x4xf32>
    %485 = arith.addf %479, %484 : vector<8x4xf32>
    %486 = arith.mulf %466, %485 : vector<8x4xf32>
    %487 = vector.extract_strided_slice %445 {offsets = [0, 128], sizes = [8, 64], strides = [1, 1]} : vector<8x192xf32> to vector<8x64xf32>
    %cst_91 = arith.constant dense<0.000000e+00> : vector<8x64xf32>
    %488 = tpu.matmul %486, %2, %cst_91 {dimension_numbers = #tpu.dot_dimension_numbers<[1], [0], [0], [1], [0, 0, 1, 1], [], []>} : vector<8x4xf32>, vector<4x64xf32>, vector<8x64xf32> -> vector<8x64xf32>
    %489 = arith.addf %487, %488 : vector<8x64xf32>
    %490 = vector.extract_strided_slice %489 {offsets = [0, 0], sizes = [8, 16], strides = [1, 1]} : vector<8x64xf32> to vector<8x16xf32>
    %491 = arith.addf %490, %13 : vector<8x16xf32>
    %cst_92 = arith.constant 5.000000e-01 : f32
    %492 = vector.broadcast %cst_92 : f32 to vector<8x16xf32>
    %493 = arith.mulf %492, %491 : vector<8x16xf32>
    %494 = math.tanh %493 : vector<8x16xf32>
    %cst_93 = arith.constant 1.000000e+00 : f32
    %495 = vector.broadcast %cst_93 : f32 to vector<8x16xf32>
    %496 = arith.addf %494, %495 : vector<8x16xf32>
    %cst_94 = arith.constant 5.000000e-01 : f32
    %497 = vector.broadcast %cst_94 : f32 to vector<8x16xf32>
    %498 = arith.mulf %497, %496 : vector<8x16xf32>
    %499 = vector.extract_strided_slice %489 {offsets = [0, 16], sizes = [8, 16], strides = [1, 1]} : vector<8x64xf32> to vector<8x16xf32>
    %500 = arith.addf %499, %16 : vector<8x16xf32>
    %cst_95 = arith.constant 5.000000e-01 : f32
    %501 = vector.broadcast %cst_95 : f32 to vector<8x16xf32>
    %502 = arith.mulf %501, %500 : vector<8x16xf32>
    %503 = math.tanh %502 : vector<8x16xf32>
    %cst_96 = arith.constant 1.000000e+00 : f32
    %504 = vector.broadcast %cst_96 : f32 to vector<8x16xf32>
    %505 = arith.addf %503, %504 : vector<8x16xf32>
    %cst_97 = arith.constant 5.000000e-01 : f32
    %506 = vector.broadcast %cst_97 : f32 to vector<8x16xf32>
    %507 = arith.mulf %506, %505 : vector<8x16xf32>
    %508 = vector.extract_strided_slice %489 {offsets = [0, 32], sizes = [8, 16], strides = [1, 1]} : vector<8x64xf32> to vector<8x16xf32>
    %509 = arith.addf %508, %19 : vector<8x16xf32>
    %510 = math.tanh %509 : vector<8x16xf32>
    %511 = vector.extract_strided_slice %489 {offsets = [0, 48], sizes = [8, 16], strides = [1, 1]} : vector<8x64xf32> to vector<8x16xf32>
    %512 = arith.addf %511, %22 : vector<8x16xf32>
    %cst_98 = arith.constant 5.000000e-01 : f32
    %513 = vector.broadcast %cst_98 : f32 to vector<8x16xf32>
    %514 = arith.mulf %513, %512 : vector<8x16xf32>
    %515 = math.tanh %514 : vector<8x16xf32>
    %cst_99 = arith.constant 1.000000e+00 : f32
    %516 = vector.broadcast %cst_99 : f32 to vector<8x16xf32>
    %517 = arith.addf %515, %516 : vector<8x16xf32>
    %cst_100 = arith.constant 5.000000e-01 : f32
    %518 = vector.broadcast %cst_100 : f32 to vector<8x16xf32>
    %519 = arith.mulf %518, %517 : vector<8x16xf32>
    %520 = arith.mulf %507, %441 : vector<8x16xf32>
    %521 = arith.mulf %498, %510 : vector<8x16xf32>
    %522 = arith.addf %520, %521 : vector<8x16xf32>
    %523 = math.tanh %522 : vector<8x16xf32>
    %524 = arith.mulf %519, %523 : vector<8x16xf32>
    %525 = arith.addf %444, %524 : vector<8x16xf32>
    %cst_101 = arith.constant dense<0.000000e+00> : vector<8x192xf32>
    %526 = tpu.matmul %524, %1, %cst_101 {dimension_numbers = #tpu.dot_dimension_numbers<[1], [0], [0], [1], [0, 0, 1, 1], [], []>} : vector<8x16xf32>, vector<16x192xf32>, vector<8x192xf32> -> vector<8x192xf32>
    %527 = vector.extract_strided_slice %526 {offsets = [0, 0], sizes = [8, 3], strides = [1, 1]} : vector<8x192xf32> to vector<8x3xf32>
    %528 = vector.extract_strided_slice %29 {offsets = [0, 6], sizes = [8, 3], strides = [1, 1]} : vector<8x10xf32> to vector<8x3xf32>
    %529 = arith.addf %527, %528 : vector<8x3xf32>
    %530 = arith.addf %529, %7 : vector<8x3xf32>
    %531 = math.tanh %530 : vector<8x3xf32>
    %532 = math.exp %531 : vector<8x3xf32>
    %cst_102 = arith.constant dense<0.000000e+00> : vector<8xf32>
    %533 = vector.multi_reduction <add>, %532, %cst_102 [1] : vector<8x3xf32> to vector<8xf32>
    %534 = vector.shape_cast %533 : vector<8xf32> to vector<8x1xf32>
    %535 = vector.broadcast %534 : vector<8x1xf32> to vector<8x3xf32>
    %536 = arith.divf %532, %535 : vector<8x3xf32>
    %537 = vector.extract_strided_slice %526 {offsets = [0, 3], sizes = [8, 4], strides = [1, 1]} : vector<8x192xf32> to vector<8x4xf32>
    %538 = vector.extract_strided_slice %54 {offsets = [0, 6, 0], sizes = [8, 1, 4], strides = [1, 1, 1]} : vector<8x8x4xf32> to vector<8x1x4xf32>
    %539 = vector.shape_cast %538 : vector<8x1x4xf32> to vector<8x4xf32>
    %540 = arith.addf %537, %539 : vector<8x4xf32>
    %541 = arith.addf %540, %10 : vector<8x4xf32>
    %542 = math.tanh %541 : vector<8x4xf32>
    %543 = math.exp %542 : vector<8x4xf32>
    %cst_103 = arith.constant dense<0.000000e+00> : vector<8xf32>
    %544 = vector.multi_reduction <add>, %543, %cst_103 [1] : vector<8x4xf32> to vector<8xf32>
    %545 = vector.shape_cast %544 : vector<8xf32> to vector<8x1xf32>
    %546 = vector.broadcast %545 : vector<8x1xf32> to vector<8x4xf32>
    %547 = arith.divf %543, %546 : vector<8x4xf32>
    %cst_104 = arith.constant 0.000000e+00 : f32
    %548 = vector.broadcast %cst_104 : f32 to vector<8x4xf32>
    %549 = vector.extract_strided_slice %536 {offsets = [0, 0], sizes = [8, 1], strides = [1, 1]} : vector<8x3xf32> to vector<8x1xf32>
    %550 = vector.extract_strided_slice %0 {offsets = [0, 4, 0], sizes = [8, 1, 4], strides = [1, 1, 1]} : vector<8x8x4xf32> to vector<8x1x4xf32>
    %551 = vector.shape_cast %550 : vector<8x1x4xf32> to vector<8x4xf32>
    %552 = vector.broadcast %549 : vector<8x1xf32> to vector<8x4xf32>
    %553 = arith.mulf %552, %551 : vector<8x4xf32>
    %554 = arith.addf %548, %553 : vector<8x4xf32>
    %555 = vector.extract_strided_slice %536 {offsets = [0, 1], sizes = [8, 1], strides = [1, 1]} : vector<8x3xf32> to vector<8x1xf32>
    %556 = vector.extract_strided_slice %0 {offsets = [0, 5, 0], sizes = [8, 1, 4], strides = [1, 1, 1]} : vector<8x8x4xf32> to vector<8x1x4xf32>
    %557 = vector.shape_cast %556 : vector<8x1x4xf32> to vector<8x4xf32>
    %558 = vector.broadcast %555 : vector<8x1xf32> to vector<8x4xf32>
    %559 = arith.mulf %558, %557 : vector<8x4xf32>
    %560 = arith.addf %554, %559 : vector<8x4xf32>
    %561 = vector.extract_strided_slice %536 {offsets = [0, 2], sizes = [8, 1], strides = [1, 1]} : vector<8x3xf32> to vector<8x1xf32>
    %562 = vector.extract_strided_slice %0 {offsets = [0, 6, 0], sizes = [8, 1, 4], strides = [1, 1, 1]} : vector<8x8x4xf32> to vector<8x1x4xf32>
    %563 = vector.shape_cast %562 : vector<8x1x4xf32> to vector<8x4xf32>
    %564 = vector.broadcast %561 : vector<8x1xf32> to vector<8x4xf32>
    %565 = arith.mulf %564, %563 : vector<8x4xf32>
    %566 = arith.addf %560, %565 : vector<8x4xf32>
    %567 = arith.mulf %547, %566 : vector<8x4xf32>
    %568 = vector.extract_strided_slice %526 {offsets = [0, 128], sizes = [8, 64], strides = [1, 1]} : vector<8x192xf32> to vector<8x64xf32>
    %cst_105 = arith.constant dense<0.000000e+00> : vector<8x64xf32>
    %569 = tpu.matmul %567, %2, %cst_105 {dimension_numbers = #tpu.dot_dimension_numbers<[1], [0], [0], [1], [0, 0, 1, 1], [], []>} : vector<8x4xf32>, vector<4x64xf32>, vector<8x64xf32> -> vector<8x64xf32>
    %570 = arith.addf %568, %569 : vector<8x64xf32>
    %571 = vector.extract_strided_slice %570 {offsets = [0, 0], sizes = [8, 16], strides = [1, 1]} : vector<8x64xf32> to vector<8x16xf32>
    %572 = arith.addf %571, %13 : vector<8x16xf32>
    %cst_106 = arith.constant 5.000000e-01 : f32
    %573 = vector.broadcast %cst_106 : f32 to vector<8x16xf32>
    %574 = arith.mulf %573, %572 : vector<8x16xf32>
    %575 = math.tanh %574 : vector<8x16xf32>
    %cst_107 = arith.constant 1.000000e+00 : f32
    %576 = vector.broadcast %cst_107 : f32 to vector<8x16xf32>
    %577 = arith.addf %575, %576 : vector<8x16xf32>
    %cst_108 = arith.constant 5.000000e-01 : f32
    %578 = vector.broadcast %cst_108 : f32 to vector<8x16xf32>
    %579 = arith.mulf %578, %577 : vector<8x16xf32>
    %580 = vector.extract_strided_slice %570 {offsets = [0, 16], sizes = [8, 16], strides = [1, 1]} : vector<8x64xf32> to vector<8x16xf32>
    %581 = arith.addf %580, %16 : vector<8x16xf32>
    %cst_109 = arith.constant 5.000000e-01 : f32
    %582 = vector.broadcast %cst_109 : f32 to vector<8x16xf32>
    %583 = arith.mulf %582, %581 : vector<8x16xf32>
    %584 = math.tanh %583 : vector<8x16xf32>
    %cst_110 = arith.constant 1.000000e+00 : f32
    %585 = vector.broadcast %cst_110 : f32 to vector<8x16xf32>
    %586 = arith.addf %584, %585 : vector<8x16xf32>
    %cst_111 = arith.constant 5.000000e-01 : f32
    %587 = vector.broadcast %cst_111 : f32 to vector<8x16xf32>
    %588 = arith.mulf %587, %586 : vector<8x16xf32>
    %589 = vector.extract_strided_slice %570 {offsets = [0, 32], sizes = [8, 16], strides = [1, 1]} : vector<8x64xf32> to vector<8x16xf32>
    %590 = arith.addf %589, %19 : vector<8x16xf32>
    %591 = math.tanh %590 : vector<8x16xf32>
    %592 = vector.extract_strided_slice %570 {offsets = [0, 48], sizes = [8, 16], strides = [1, 1]} : vector<8x64xf32> to vector<8x16xf32>
    %593 = arith.addf %592, %22 : vector<8x16xf32>
    %cst_112 = arith.constant 5.000000e-01 : f32
    %594 = vector.broadcast %cst_112 : f32 to vector<8x16xf32>
    %595 = arith.mulf %594, %593 : vector<8x16xf32>
    %596 = math.tanh %595 : vector<8x16xf32>
    %cst_113 = arith.constant 1.000000e+00 : f32
    %597 = vector.broadcast %cst_113 : f32 to vector<8x16xf32>
    %598 = arith.addf %596, %597 : vector<8x16xf32>
    %cst_114 = arith.constant 5.000000e-01 : f32
    %599 = vector.broadcast %cst_114 : f32 to vector<8x16xf32>
    %600 = arith.mulf %599, %598 : vector<8x16xf32>
    %601 = arith.mulf %588, %522 : vector<8x16xf32>
    %602 = arith.mulf %579, %591 : vector<8x16xf32>
    %603 = arith.addf %601, %602 : vector<8x16xf32>
    %604 = math.tanh %603 : vector<8x16xf32>
    %605 = arith.mulf %600, %604 : vector<8x16xf32>
    %606 = arith.addf %525, %605 : vector<8x16xf32>
    %cst_115 = arith.constant dense<0.000000e+00> : vector<8x192xf32>
    %607 = tpu.matmul %605, %1, %cst_115 {dimension_numbers = #tpu.dot_dimension_numbers<[1], [0], [0], [1], [0, 0, 1, 1], [], []>} : vector<8x16xf32>, vector<16x192xf32>, vector<8x192xf32> -> vector<8x192xf32>
    %608 = vector.extract_strided_slice %607 {offsets = [0, 0], sizes = [8, 3], strides = [1, 1]} : vector<8x192xf32> to vector<8x3xf32>
    %609 = vector.extract_strided_slice %29 {offsets = [0, 7], sizes = [8, 3], strides = [1, 1]} : vector<8x10xf32> to vector<8x3xf32>
    %610 = arith.addf %608, %609 : vector<8x3xf32>
    %611 = arith.addf %610, %7 : vector<8x3xf32>
    %612 = math.tanh %611 : vector<8x3xf32>
    %613 = math.exp %612 : vector<8x3xf32>
    %cst_116 = arith.constant dense<0.000000e+00> : vector<8xf32>
    %614 = vector.multi_reduction <add>, %613, %cst_116 [1] : vector<8x3xf32> to vector<8xf32>
    %615 = vector.shape_cast %614 : vector<8xf32> to vector<8x1xf32>
    %616 = vector.broadcast %615 : vector<8x1xf32> to vector<8x3xf32>
    %617 = arith.divf %613, %616 : vector<8x3xf32>
    %618 = vector.extract_strided_slice %607 {offsets = [0, 3], sizes = [8, 4], strides = [1, 1]} : vector<8x192xf32> to vector<8x4xf32>
    %619 = vector.extract_strided_slice %54 {offsets = [0, 7, 0], sizes = [8, 1, 4], strides = [1, 1, 1]} : vector<8x8x4xf32> to vector<8x1x4xf32>
    %620 = vector.shape_cast %619 : vector<8x1x4xf32> to vector<8x4xf32>
    %621 = arith.addf %618, %620 : vector<8x4xf32>
    %622 = arith.addf %621, %10 : vector<8x4xf32>
    %623 = math.tanh %622 : vector<8x4xf32>
    %624 = math.exp %623 : vector<8x4xf32>
    %cst_117 = arith.constant dense<0.000000e+00> : vector<8xf32>
    %625 = vector.multi_reduction <add>, %624, %cst_117 [1] : vector<8x4xf32> to vector<8xf32>
    %626 = vector.shape_cast %625 : vector<8xf32> to vector<8x1xf32>
    %627 = vector.broadcast %626 : vector<8x1xf32> to vector<8x4xf32>
    %628 = arith.divf %624, %627 : vector<8x4xf32>
    %cst_118 = arith.constant 0.000000e+00 : f32
    %629 = vector.broadcast %cst_118 : f32 to vector<8x4xf32>
    %630 = vector.extract_strided_slice %617 {offsets = [0, 0], sizes = [8, 1], strides = [1, 1]} : vector<8x3xf32> to vector<8x1xf32>
    %631 = vector.extract_strided_slice %0 {offsets = [0, 5, 0], sizes = [8, 1, 4], strides = [1, 1, 1]} : vector<8x8x4xf32> to vector<8x1x4xf32>
    %632 = vector.shape_cast %631 : vector<8x1x4xf32> to vector<8x4xf32>
    %633 = vector.broadcast %630 : vector<8x1xf32> to vector<8x4xf32>
    %634 = arith.mulf %633, %632 : vector<8x4xf32>
    %635 = arith.addf %629, %634 : vector<8x4xf32>
    %636 = vector.extract_strided_slice %617 {offsets = [0, 1], sizes = [8, 1], strides = [1, 1]} : vector<8x3xf32> to vector<8x1xf32>
    %637 = vector.extract_strided_slice %0 {offsets = [0, 6, 0], sizes = [8, 1, 4], strides = [1, 1, 1]} : vector<8x8x4xf32> to vector<8x1x4xf32>
    %638 = vector.shape_cast %637 : vector<8x1x4xf32> to vector<8x4xf32>
    %639 = vector.broadcast %636 : vector<8x1xf32> to vector<8x4xf32>
    %640 = arith.mulf %639, %638 : vector<8x4xf32>
    %641 = arith.addf %635, %640 : vector<8x4xf32>
    %642 = vector.extract_strided_slice %617 {offsets = [0, 2], sizes = [8, 1], strides = [1, 1]} : vector<8x3xf32> to vector<8x1xf32>
    %643 = vector.extract_strided_slice %0 {offsets = [0, 7, 0], sizes = [8, 1, 4], strides = [1, 1, 1]} : vector<8x8x4xf32> to vector<8x1x4xf32>
    %644 = vector.shape_cast %643 : vector<8x1x4xf32> to vector<8x4xf32>
    %645 = vector.broadcast %642 : vector<8x1xf32> to vector<8x4xf32>
    %646 = arith.mulf %645, %644 : vector<8x4xf32>
    %647 = arith.addf %641, %646 : vector<8x4xf32>
    %648 = arith.mulf %628, %647 : vector<8x4xf32>
    %649 = vector.extract_strided_slice %607 {offsets = [0, 128], sizes = [8, 64], strides = [1, 1]} : vector<8x192xf32> to vector<8x64xf32>
    %cst_119 = arith.constant dense<0.000000e+00> : vector<8x64xf32>
    %650 = tpu.matmul %648, %2, %cst_119 {dimension_numbers = #tpu.dot_dimension_numbers<[1], [0], [0], [1], [0, 0, 1, 1], [], []>} : vector<8x4xf32>, vector<4x64xf32>, vector<8x64xf32> -> vector<8x64xf32>
    %651 = arith.addf %649, %650 : vector<8x64xf32>
    %652 = vector.extract_strided_slice %651 {offsets = [0, 0], sizes = [8, 16], strides = [1, 1]} : vector<8x64xf32> to vector<8x16xf32>
    %653 = arith.addf %652, %13 : vector<8x16xf32>
    %cst_120 = arith.constant 5.000000e-01 : f32
    %654 = vector.broadcast %cst_120 : f32 to vector<8x16xf32>
    %655 = arith.mulf %654, %653 : vector<8x16xf32>
    %656 = math.tanh %655 : vector<8x16xf32>
    %cst_121 = arith.constant 1.000000e+00 : f32
    %657 = vector.broadcast %cst_121 : f32 to vector<8x16xf32>
    %658 = arith.addf %656, %657 : vector<8x16xf32>
    %cst_122 = arith.constant 5.000000e-01 : f32
    %659 = vector.broadcast %cst_122 : f32 to vector<8x16xf32>
    %660 = arith.mulf %659, %658 : vector<8x16xf32>
    %661 = vector.extract_strided_slice %651 {offsets = [0, 16], sizes = [8, 16], strides = [1, 1]} : vector<8x64xf32> to vector<8x16xf32>
    %662 = arith.addf %661, %16 : vector<8x16xf32>
    %cst_123 = arith.constant 5.000000e-01 : f32
    %663 = vector.broadcast %cst_123 : f32 to vector<8x16xf32>
    %664 = arith.mulf %663, %662 : vector<8x16xf32>
    %665 = math.tanh %664 : vector<8x16xf32>
    %cst_124 = arith.constant 1.000000e+00 : f32
    %666 = vector.broadcast %cst_124 : f32 to vector<8x16xf32>
    %667 = arith.addf %665, %666 : vector<8x16xf32>
    %cst_125 = arith.constant 5.000000e-01 : f32
    %668 = vector.broadcast %cst_125 : f32 to vector<8x16xf32>
    %669 = arith.mulf %668, %667 : vector<8x16xf32>
    %670 = vector.extract_strided_slice %651 {offsets = [0, 32], sizes = [8, 16], strides = [1, 1]} : vector<8x64xf32> to vector<8x16xf32>
    %671 = arith.addf %670, %19 : vector<8x16xf32>
    %672 = math.tanh %671 : vector<8x16xf32>
    %673 = vector.extract_strided_slice %651 {offsets = [0, 48], sizes = [8, 16], strides = [1, 1]} : vector<8x64xf32> to vector<8x16xf32>
    %674 = arith.addf %673, %22 : vector<8x16xf32>
    %cst_126 = arith.constant 5.000000e-01 : f32
    %675 = vector.broadcast %cst_126 : f32 to vector<8x16xf32>
    %676 = arith.mulf %675, %674 : vector<8x16xf32>
    %677 = math.tanh %676 : vector<8x16xf32>
    %cst_127 = arith.constant 1.000000e+00 : f32
    %678 = vector.broadcast %cst_127 : f32 to vector<8x16xf32>
    %679 = arith.addf %677, %678 : vector<8x16xf32>
    %cst_128 = arith.constant 5.000000e-01 : f32
    %680 = vector.broadcast %cst_128 : f32 to vector<8x16xf32>
    %681 = arith.mulf %680, %679 : vector<8x16xf32>
    %682 = arith.mulf %669, %603 : vector<8x16xf32>
    %683 = arith.mulf %660, %672 : vector<8x16xf32>
    %684 = arith.addf %682, %683 : vector<8x16xf32>
    %685 = math.tanh %684 : vector<8x16xf32>
    %686 = arith.mulf %681, %685 : vector<8x16xf32>
    %687 = arith.addf %606, %686 : vector<8x16xf32>
    %cst_129 = arith.constant dense<0.000000e+00> : vector<8x128xf32>
    %688 = tpu.matmul %687, %3, %cst_129 {dimension_numbers = #tpu.dot_dimension_numbers<[1], [0], [0], [1], [0, 0, 1, 1], [], []>} : vector<8x16xf32>, vector<16x128xf32>, vector<8x128xf32> -> vector<8x128xf32>
    %c0_130 = arith.constant 0 : index
    %c0_131 = arith.constant 0 : index
    %689 = vector.load %arg6[%c0_130, %c0_131] : memref<8x128xf32, #tpu.memory_space<vmem>>, vector<8x128xf32>
    tpu.vector_store %arg6[%c0_130, %c0_131], %688 {strides = array<i32>} : memref<8x128xf32, #tpu.memory_space<vmem>>, vector<8x128xf32>,
    return
  }
  func.func @transform_0(%arg0: i32) -> (i32, i32, i32) {
    %c0_i32 = arith.constant 0 : i32
    %c0_i32_0 = arith.constant 0 : i32
    %c0_i32_1 = arith.constant 0 : i32
    return %arg0, %c0_i32, %c0_i32_0 : i32, i32, i32
  }
  func.func @transform_1(%arg0: i32) -> (i32, i32) {
    %c0_i32 = arith.constant 0 : i32
    %c0_i32_0 = arith.constant 0 : i32
    %c0_i32_1 = arith.constant 0 : i32
    return %c0_i32, %c0_i32_0 : i32, i32
  }
  func.func @transform_2(%arg0: i32) -> (i32, i32) {
    %c0_i32 = arith.constant 0 : i32
    %c0_i32_0 = arith.constant 0 : i32
    %c0_i32_1 = arith.constant 0 : i32
    return %c0_i32, %c0_i32_0 : i32, i32
  }
  func.func @transform_3(%arg0: i32) -> (i32, i32) {
    %c0_i32 = arith.constant 0 : i32
    %c0_i32_0 = arith.constant 0 : i32
    %c0_i32_1 = arith.constant 0 : i32
    return %c0_i32, %c0_i32_0 : i32, i32
  }
  func.func @transform_4(%arg0: i32) -> (i32, i32) {
    %c0_i32 = arith.constant 0 : i32
    %c0_i32_0 = arith.constant 0 : i32
    %c0_i32_1 = arith.constant 0 : i32
    return %c0_i32, %c0_i32_0 : i32, i32
  }
  func.func @transform_5(%arg0: i32) -> (i32, i32) {
    %c0_i32 = arith.constant 0 : i32
    %c0_i32_0 = arith.constant 0 : i32
    return %arg0, %c0_i32 : i32, i32
  }
}

</mosaic_0001>

<llo_original>
// kernel: tpu_custom_call.1
$region0: #{tpu_custom_call.1}
  #allocation0 [shape = 'u32[]', space=smem, size = 0x4, offset = 0x4, fixed_abs, tag = 'smem constant byte address 0x4 - core index']
  #allocation1 [shape = 'u32[72,128]{1,0:T(1,128)}', space=vmem, size = 0x9000, scoped, tag = 'internal scratch']
  %s0 = inlined_call_operand.vmem [shape: f32[8,8,4], index: 0, kind: input, shape index: {}]
  %s1 = inlined_call_operand.vmem [shape: f32[16,192], index: 1, kind: input, shape index: {}]
  %s2 = inlined_call_operand.vmem [shape: f32[4,64], index: 2, kind: input, shape index: {}]
  %s3 = inlined_call_operand.vmem [shape: f32[16,128], index: 3, kind: input, shape index: {}]
  %s4 = inlined_call_operand.vmem [shape: f32[1,78], index: 4, kind: input, shape index: {}]
  %s5 = inlined_call_operand.hbm [shape: f32[8,128], index: 5, kind: output, shape index: {}]
  %s6 = sld [smem:[#allocation0]]
  $region30: #{tpu_custom_call.1} parent=0
    _
  %s8 = ssub.s32 1, %s6
  %s9 = scalar_select 0, %s8, %s6
  $region1: #{tpu_custom_call.1} parent=0
    #allocation2 [shape = 'u8[4096]{0}', space=vmem, size = 0x1000, scoped, tag = 'output window, operand 0, single buffered']
    #allocation3 [shape = 's32[1]{0}', space=sflag, size = 0x4, scoped, tag = 'scoped memory for tpu_custom_call.1']
    %10 = vsyncpa [#allocation3], 0
    // Predicated region
    $region2: #{tpu_custom_call.1} parent=1 // pred_check
      _
    $region3: #{tpu_custom_call.1} parent=1 // pred_check_branch
      %12 = sbr.rel (0) target = $region5
    $region4: #{tpu_custom_call.1} parent=1 // pred_region
      _
    $region5: #{tpu_custom_call.1} parent=1 // pred_fallthru
      _
    // Predicated region
    $region6: #{tpu_custom_call.1} parent=1 // pred_check
      _
    $region7: #{tpu_custom_call.1} parent=1 // pred_check_branch
      %14 = sbr.rel (0) target = $region9
    $region8: #{tpu_custom_call.1} parent=1 // pred_region
      _
    $region9: #{tpu_custom_call.1} parent=1 // pred_fallthru
      _
    // Predicated region
    $region10: #{tpu_custom_call.1} parent=1 // pred_check
      _
    $region11: #{tpu_custom_call.1} parent=1 // pred_check_branch
      %16 = sbr.rel (0) target = $region13
    $region12: #{tpu_custom_call.1} parent=1 // pred_region
      _
    $region13: #{tpu_custom_call.1} parent=1 // pred_fallthru
      _
    // Predicated region
    $region14: #{tpu_custom_call.1} parent=1 // pred_check
      _
    $region15: #{tpu_custom_call.1} parent=1 // pred_check_branch
      %18 = sbr.rel (0) target = $region17
    $region16: #{tpu_custom_call.1} parent=1 // pred_region
      _
    $region17: #{tpu_custom_call.1} parent=1 // pred_fallthru
      _
    // Predicated region
    $region18: #{tpu_custom_call.1} parent=1 // pred_check
      _
    $region19: #{tpu_custom_call.1} parent=1 // pred_check_branch
      %20 = sbr.rel (0) target = $region21
    $region20: #{tpu_custom_call.1} parent=1 // pred_region
      _
    $region21: #{tpu_custom_call.1} parent=1 // pred_fallthru
      _
    %v21 = vld [vmem:[%s0] sm:$0xff]
    %v22 = vld [vmem:[%s0 + $0x8] sm:$0xff]
    %v23 = vld [vmem:[%s0 + $0x10] sm:$0xff]
    %v24 = vld [vmem:[%s0 + $0x18] sm:$0xff]
    %v25 = vld [vmem:[%s0 + $0x20] sm:$0xff]
    %v26 = vld [vmem:[%s0 + $0x28] sm:$0xff]
    %v27 = vld [vmem:[%s0 + $0x30] sm:$0xff]
    %v28 = vld [vmem:[%s0 + $0x38] sm:$0xff]
    %v29 = vld [vmem:[%s1] sm:$0xff]
    %v30 = vld [vmem:[%s1 + $0x8] sm:$0xff]
    %v31 = vld [vmem:[%s1 + $0x10] sm:$0xff]
    %v32 = vld [vmem:[%s1 + $0x18] sm:$0xff]
    %v33 = vld [vmem:[%s2] sm:$0xf]
    %v34 = vld [vmem:[%s3] sm:$0xff]
    %v35 = vld [vmem:[%s3 + $0x8] sm:$0xff]
    %v36 = vld [vmem:[%s4] sm:$0x1]
    %v38 = vperm.slane %v36, 0
    %40 = vrot.lane.b32.xlu0 %v38, 121
    %v41 = vpop.permute.xlu0 %40
    %v43 = vmul.f32 %v21, %v41
    %v44 = vmul.f32 %v22, %v41
    %v45 = vmul.f32 %v23, %v41
    %v46 = vmul.f32 %v24, %v41
    %v47 = vmul.f32 %v25, %v41
    %v48 = vmul.f32 %v26, %v41
    %v49 = vmul.f32 %v27, %v41
    %v50 = vmul.f32 %v28, %v41
    %vm51 = vcmask 31744
    %v52 = vsel %vm51, %v43, 0.0
    %53 = vadd.xlane.f32.xlu0 %v52
    %v54 = vpop.xlane.xlu0 %53
    %v55 = vsel %vm51, %v44, 0.0
    %56 = vadd.xlane.f32.xlu0 %v55
    %v57 = vpop.xlane.xlu0 %56
    %v58 = vsel %vm51, %v45, 0.0
    %59 = vadd.xlane.f32.xlu0 %v58
    %v60 = vpop.xlane.xlu0 %59
    %v61 = vsel %vm51, %v46, 0.0
    %62 = vadd.xlane.f32.xlu0 %v61
    %v63 = vpop.xlane.xlu0 %62
    %v64 = vsel %vm51, %v47, 0.0
    %65 = vadd.xlane.f32.xlu0 %v64
    %v66 = vpop.xlane.xlu0 %65
    %v67 = vsel %vm51, %v48, 0.0
    %68 = vadd.xlane.f32.xlu0 %v67
    %v69 = vpop.xlane.xlu0 %68
    %v70 = vsel %vm51, %v49, 0.0
    %71 = vadd.xlane.f32.xlu0 %v70
    %v72 = vpop.xlane.xlu0 %71
    %v73 = vsel %vm51, %v50, 0.0
    %74 = vadd.xlane.f32.xlu0 %v73
    %v75 = vpop.xlane.xlu0 %74
    %v84 = vlaneseq
    %v85 = vand.u32 %v84, 127
    %v86 = vadd.s32 %v85, 4294967294
    %v87 = vperm.slane %v54, %v86
    %v88 = vperm.slane %v57, %v86
    %v89 = vperm.slane %v60, %v86
    %v90 = vperm.slane %v63, %v86
    %v91 = vperm.slane %v66, %v86
    %v92 = vperm.slane %v69, %v86
    %v93 = vperm.slane %v72, %v86
    %v94 = vperm.slane %v75, %v86
    %vm95 = vcmask 1041409
    %v96 = vsel %vm95, %v88, %v87
    %vm97 = vcmask 1042434
    %v98 = vsel %vm97, %v89, %v96
    %vm99 = vcmask 1043459
    %v100 = vsel %vm99, %v90, %v98
    %vm101 = vcmask 1044484
    %v102 = vsel %vm101, %v91, %v100
    %vm103 = vcmask 1045509
    %v104 = vsel %vm103, %v92, %v102
    %vm105 = vcmask 1046534
    %v106 = vsel %vm105, %v93, %v104
    %vm107 = vcmask 1047559
    %v108 = vsel %vm107, %v94, %v106
    %vm110 = vcmask 15360
    %v111 = vsel %vm110, 0.0, %v108
    %112 = vset.pattern.permute.xlu0 13
    %113 = vperm.xlu0 %112, %v38
    %v114 = vpop.permute.xlu0 %113
    %v116 = vmul.f32 %v114, %v21
    %v117 = vmul.f32 %v114, %v22
    %v118 = vmul.f32 %v114, %v23
    %v119 = vmul.f32 %v114, %v24
    %v120 = vmul.f32 %v114, %v25
    %v121 = vmul.f32 %v114, %v26
    %v122 = vmul.f32 %v114, %v27
    %v123 = vmul.f32 %v114, %v28
    %v124 = vadd.f32 %v116, 0.0
    %v125 = vadd.f32 %v117, 0.0
    %v126 = vadd.f32 %v118, 0.0
    %v127 = vadd.f32 %v119, 0.0
    %v128 = vadd.f32 %v120, 0.0
    %v129 = vadd.f32 %v121, 0.0
    %v130 = vadd.f32 %v122, 0.0
    %v131 = vadd.f32 %v123, 0.0
    %132 = vset.pattern.permute.xlu0 12
    %133 = vperm.xlu0 %132, %v38
    %v134 = vpop.permute.xlu0 %133
    %v144 = vrot.slane %v21, 7
    %v145 = vrot.slane %v22, 7
    %v146 = vrot.slane %v23, 7
    %v147 = vrot.slane %v24, 7
    %v148 = vrot.slane %v25, 7
    %v149 = vrot.slane %v26, 7
    %v150 = vrot.slane %v27, 7
    %v151 = vrot.slane %v28, 7
    %vm160 = vcmask 1040384
    %v161 = vsel %vm160, 0.0, %v144
    %v162 = vsel %vm160, 0.0, %v145
    %v163 = vsel %vm160, 0.0, %v146
    %v164 = vsel %vm160, 0.0, %v147
    %v165 = vsel %vm160, 0.0, %v148
    %v166 = vsel %vm160, 0.0, %v149
    %v167 = vsel %vm160, 0.0, %v150
    %v168 = vsel %vm160, 0.0, %v151
    %v169 = vmul.f32 %v134, %v161
    %v170 = vmul.f32 %v134, %v162
    %v171 = vmul.f32 %v134, %v163
    %v172 = vmul.f32 %v134, %v164
    %v173 = vmul.f32 %v134, %v165
    %v174 = vmul.f32 %v134, %v166
    %v175 = vmul.f32 %v134, %v167
    %v176 = vmul.f32 %v134, %v168
    %v177 = vadd.f32 %v124, %v169
    %v178 = vadd.f32 %v125, %v170
    %v179 = vadd.f32 %v126, %v171
    %v180 = vadd.f32 %v127, %v172
    %v181 = vadd.f32 %v128, %v173
    %v182 = vadd.f32 %v129, %v174
    %v183 = vadd.f32 %v130, %v175
    %v184 = vadd.f32 %v131, %v176
    %185 = vset.pattern.permute.xlu0 11
    %186 = vperm.xlu0 %185, %v38
    %v187 = vpop.permute.xlu0 %186
    %v189 = vrot.slane %v21, 6
    %v190 = vrot.slane %v22, 6
    %v191 = vrot.slane %v23, 6
    %v192 = vrot.slane %v24, 6
    %v193 = vrot.slane %v25, 6
    %v194 = vrot.slane %v26, 6
    %v195 = vrot.slane %v27, 6
    %v196 = vrot.slane %v28, 6
    %vm205 = vcmask 1041408
    %v206 = vsel %vm205, 0.0, %v189
    %v207 = vsel %vm205, 0.0, %v190
    %v208 = vsel %vm205, 0.0, %v191
    %v209 = vsel %vm205, 0.0, %v192
    %v210 = vsel %vm205, 0.0, %v193
    %v211 = vsel %vm205, 0.0, %v194
    %v212 = vsel %vm205, 0.0, %v195
    %v213 = vsel %vm205, 0.0, %v196
    %v214 = vmul.f32 %v187, %v206
    %v215 = vmul.f32 %v187, %v207
    %v216 = vmul.f32 %v187, %v208
    %v217 = vmul.f32 %v187, %v209
    %v218 = vmul.f32 %v187, %v210
    %v219 = vmul.f32 %v187, %v211
    %v220 = vmul.f32 %v187, %v212
    %v221 = vmul.f32 %v187, %v213
    %v222 = vadd.f32 %v177, %v214
    %v223 = vadd.f32 %v178, %v215
    %v224 = vadd.f32 %v179, %v216
    %v225 = vadd.f32 %v180, %v217
    %v226 = vadd.f32 %v181, %v218
    %v227 = vadd.f32 %v182, %v219
    %v228 = vadd.f32 %v183, %v220
    %v229 = vadd.f32 %v184, %v221
    %vm230 = vcmask 130048
    %v232 = vsel %vm230, 0.0, 0
    %234 = vmatpush.msra.mxu0 0.0
    %235 = vmatpush.msra.mxu0 0.0
    %236 = vmatpush.msra.mxu0 0.0
    %237 = vmatpush.msra.mxu0 0.0
    %238 = vmatpush.msra.mxu0 0.0
    %239 = vmatpush.msra.mxu0 0.0
    %240 = vmatpush.msra.mxu0 0.0
    %241 = vmatpush.msra.mxu0 0.0
    %242 = vmatpush.msra.mxu0 0.0
    %243 = vmatpush.msra.mxu0 0.0
    %244 = vmatpush.msra.mxu0 0.0
    %245 = vmatpush.msra.mxu0 0.0
    %246 = vmatpush.msra.mxu0 0.0
    %247 = vmatpush.msra.mxu0 0.0
    %248 = vmatpush.msra.mxu0 %v31
    %249 = vmatpush.msra.mxu0 %v29
    %250 = vmatmul.f32.gmra.mxu0 %v232
    %v251 = vpop.f32.mrf.mxu0
    %v252 = vadd.f32 0.0, %v251
    %253 = vdwg.mxu0
    %254 = vmatpush.msra.mxu0 0.0
    %255 = vmatpush.msra.mxu0 0.0
    %256 = vmatpush.msra.mxu0 0.0
    %257 = vmatpush.msra.mxu0 0.0
    %258 = vmatpush.msra.mxu0 0.0
    %259 = vmatpush.msra.mxu0 0.0
    %260 = vmatpush.msra.mxu0 0.0
    %261 = vmatpush.msra.mxu0 0.0
    %262 = vmatpush.msra.mxu0 0.0
    %263 = vmatpush.msra.mxu0 0.0
    %264 = vmatpush.msra.mxu0 0.0
    %265 = vmatpush.msra.mxu0 0.0
    %266 = vmatpush.msra.mxu0 0.0
    %267 = vmatpush.msra.mxu0 0.0
    %268 = vmatpush.msra.mxu0 %v32
    %269 = vmatpush.msra.mxu0 %v30
    %270 = vmatmul.f32.gmra.mxu0 %v232
    %v271 = vpop.f32.mrf.mxu0
    %v272 = vadd.f32 0.0, %v271
    %273 = vdwg.mxu0
    %v274 = vadd.f32 %v252, %v111
    %v275 = vadd.f32 %v274, %v38
    %v276 = vtanh.pop %v275
    %v277 = vmul.f32 %v276, 1.442695
    %v278 = vpow.pop %v277
    %vm279 = vcmask 23552
    %v280 = vsel %vm279, %v278, 0.0
    %281 = vadd.xlane.f32.xlu0 %v280
    %v282 = vpop.xlane.xlu0 %281
    %v283 = vrcp.pop %v282
    %v284 = vmul.f32 %v282, %v283
    %v285 = vsub.f32 1.0, %v284
    %v286 = vmul.f32 %v283, %v285
    %v287 = vadd.f32 %v283, %v286
    %vm288 = vweird.f32 %v282
    %vm289 = vweird.f32 %v283
    %vm290 = vmor %vm288, %vm289
    %v291 = vsel %vm290, %v283, %v287
    %v292 = vand.u32 2147483647, %v282
    %vm293 = vcmp.eq.f32.partialorder %v292, 8.507059e+37
    %v294 = vand.u32 %v282, 2147483648
    %v295 = vor.u32 1.1754944e-38, %v294
    %v296 = vsel %vm293, %v295, %v291
    %v297 = vmul.f32 %v278, %v296
    %v306 = vrot.slane %v223, 7
    %v307 = vsel %vm95, %v306, %v222
    %v308 = vrot.slane %v224, 6
    %v309 = vsel %vm97, %v308, %v307
    %v310 = vrot.slane %v225, 5
    %v311 = vsel %vm99, %v310, %v309
    %v312 = vrot.slane %v226, 4
    %v313 = vsel %vm101, %v312, %v311
    %v314 = vrot.slane %v227, 3
    %v315 = vsel %vm103, %v314, %v313
    %v316 = vrot.slane %v228, 2
    %v317 = vsel %vm105, %v316, %v315
    %v318 = vrot.slane %v229, 1
    %v319 = vsel %vm107, %v318, %v317
    %320 = vrot.lane.b32.xlu0 %v319, 3
    %v321 = vpop.permute.xlu0 %320
    %v323 = vadd.f32 %v252, %v321
    %v324 = vadd.f32 %v323, %v38
    %v325 = vtanh.pop %v324
    %v326 = vmul.f32 %v325, 1.442695
    %v327 = vpow.pop %v326
    %329 = vrot.lane.b32.xlu0 %v327, 125
    %v330 = vpop.permute.xlu0 %329
    %v332 = vsel %vm51, %v330, 0.0
    %333 = vadd.xlane.f32.xlu0 %v332
    %v334 = vpop.xlane.xlu0 %333
    %v335 = vrcp.pop %v334
    %v336 = vmul.f32 %v334, %v335
    %v337 = vsub.f32 1.0, %v336
    %v338 = vmul.f32 %v335, %v337
    %v339 = vadd.f32 %v335, %v338
    %vm340 = vweird.f32 %v334
    %vm341 = vweird.f32 %v335
    %vm342 = vmor %vm340, %vm341
    %v343 = vsel %vm342, %v335, %v339
    %v344 = vand.u32 2147483647, %v334
    %vm345 = vcmp.eq.f32.partialorder %v344, 8.507059e+37
    %v346 = vand.u32 %v334, 2147483648
    %v347 = vor.u32 1.1754944e-38, %v346
    %v348 = vsel %vm345, %v347, %v343
    %v349 = vmul.f32 %v327, %v348
    %351 = vset.pattern.permute.xlu0 2
    %352 = vperm.xlu0 %351, %v297
    %v353 = vpop.permute.xlu0 %352
    %v355 = vsel %vm95, %v145, %v21
    %v356 = vsel %vm97, %v191, %v355
    %v357 = vrot.slane %v24, 5
    %v358 = vsel %vm99, %v357, %v356
    %v359 = vrot.slane %v25, 4
    %v360 = vsel %vm101, %v359, %v358
    %v361 = vrot.slane %v26, 3
    %v362 = vsel %vm103, %v361, %v360
    %v363 = vrot.slane %v27, 2
    %v364 = vsel %vm105, %v363, %v362
    %v365 = vrot.slane %v28, 1
    %v366 = vsel %vm107, %v365, %v364
    %v368 = vmul.f32 %v353, %v366
    %v369 = vadd.f32 %v368, 0.0
    %371 = vrot.lane.b32.xlu0 %v369, 3
    %v372 = vpop.permute.xlu0 %371
    %v374 = vmul.f32 %v349, %v372
    %376 = vrot.lane.b32.xlu0 %v374, 125
    %v377 = vpop.permute.xlu0 %376
    %v378 = vsel %vm51, %v377, 0
    %vm380 = vcmask 1043456
    %v382 = vsel %vm380, %v33, 0
    %384 = vmatpush.msra.mxu0 0.0
    %385 = vmatpush.msra.mxu0 0.0
    %386 = vmatpush.msra.mxu0 0.0
    %387 = vmatpush.msra.mxu0 0.0
    %388 = vmatpush.msra.mxu0 0.0
    %389 = vmatpush.msra.mxu0 0.0
    %390 = vmatpush.msra.mxu0 0.0
    %391 = vmatpush.msra.mxu0 0.0
    %392 = vmatpush.msra.mxu0 0.0
    %393 = vmatpush.msra.mxu0 0.0
    %394 = vmatpush.msra.mxu0 0.0
    %395 = vmatpush.msra.mxu0 0.0
    %396 = vmatpush.msra.mxu0 0.0
    %397 = vmatpush.msra.mxu0 0.0
    %398 = vmatpush.msra.mxu0 0.0
    %399 = vmatpush.msra.mxu0 %v382
    %400 = vmatmul.f32.gmra.mxu0 %v378
    %v401 = vpop.f32.mrf.mxu0
    %v402 = vadd.f32 0.0, %v401
    %403 = vdwg.mxu0
    %v404 = vadd.f32 %v272, %v402
    %405 = vrot.lane.b32.xlu0 %v38, 114
    %v406 = vpop.permute.xlu0 %405
    %v408 = vadd.f32 %v404, %v406
    %v409 = vmul.f32 %v408, 0.5
    %v410 = vtanh.pop %v409
    %v411 = vadd.f32 %v410, 1.0
    %v412 = vmul.f32 %v411, 0.5
    %v413 = vtanh.pop %v408
    %v414 = vmul.f32 %v412, 0.0
    %416 = vrot.lane.b32.xlu0 %v413, 96
    %v417 = vpop.permute.xlu0 %416
    %v419 = vmul.f32 %v412, %v417
    %421 = vrot.lane.b32.xlu0 %v419, 16
    %v422 = vpop.permute.xlu0 %421
    %v424 = vadd.f32 %v414, %v422
    %v425 = vtanh.pop %v424
    %427 = vrot.lane.b32.xlu0 %v425, 32
    %v428 = vpop.permute.xlu0 %427
    %v430 = vmul.f32 %v412, %v428
    %v431 = vadd.f32 %v430, 0.0
    %433 = vrot.lane.b32.xlu0 %v430, 80
    %v434 = vpop.permute.xlu0 %433
    %v435 = vsel %vm230, %v434, 0
    %437 = vmatpush.msra.mxu0 0.0
    %438 = vmatpush.msra.mxu0 0.0
    %439 = vmatpush.msra.mxu0 0.0
    %440 = vmatpush.msra.mxu0 0.0
    %441 = vmatpush.msra.mxu0 0.0
    %442 = vmatpush.msra.mxu0 0.0
    %443 = vmatpush.msra.mxu0 0.0
    %444 = vmatpush.msra.mxu0 0.0
    %445 = vmatpush.msra.mxu0 0.0
    %446 = vmatpush.msra.mxu0 0.0
    %447 = vmatpush.msra.mxu0 0.0
    %448 = vmatpush.msra.mxu0 0.0
    %449 = vmatpush.msra.mxu0 0.0
    %450 = vmatpush.msra.mxu0 0.0
    %451 = vmatpush.msra.mxu0 %v31
    %452 = vmatpush.msra.mxu0 %v29
    %453 = vmatmul.f32.gmra.mxu0 %v435
    %v454 = vpop.f32.mrf.mxu0
    %v455 = vadd.f32 0.0, %v454
    %456 = vdwg.mxu0
    %457 = vmatpush.msra.mxu0 0.0
    %458 = vmatpush.msra.mxu0 0.0
    %459 = vmatpush.msra.mxu0 0.0
    %460 = vmatpush.msra.mxu0 0.0
    %461 = vmatpush.msra.mxu0 0.0
    %462 = vmatpush.msra.mxu0 0.0
    %463 = vmatpush.msra.mxu0 0.0
    %464 = vmatpush.msra.mxu0 0.0
    %465 = vmatpush.msra.mxu0 0.0
    %466 = vmatpush.msra.mxu0 0.0
    %467 = vmatpush.msra.mxu0 0.0
    %468 = vmatpush.msra.mxu0 0.0
    %469 = vmatpush.msra.mxu0 0.0
    %470 = vmatpush.msra.mxu0 0.0
    %471 = vmatpush.msra.mxu0 %v32
    %472 = vmatpush.msra.mxu0 %v30
    %473 = vmatmul.f32.gmra.mxu0 %v435
    %v474 = vpop.f32.mrf.mxu0
    %v475 = vadd.f32 0.0, %v474
    %476 = vdwg.mxu0
    %478 = vrot.lane.b32.xlu0 %v111, 127
    %v479 = vpop.permute.xlu0 %478
    %v481 = vadd.f32 %v455, %v479
    %v482 = vadd.f32 %v481, %v38
    %v483 = vtanh.pop %v482
    %v484 = vmul.f32 %v483, 1.442695
    %v485 = vpow.pop %v484
    %v486 = vsel %vm279, %v485, 0.0
    %487 = vadd.xlane.f32.xlu0 %v486
    %v488 = vpop.xlane.xlu0 %487
    %v489 = vrcp.pop %v488
    %v490 = vmul.f32 %v488, %v489
    %v491 = vsub.f32 1.0, %v490
    %v492 = vmul.f32 %v489, %v491
    %v493 = vadd.f32 %v489, %v492
    %vm494 = vweird.f32 %v488
    %vm495 = vweird.f32 %v489
    %vm496 = vmor %vm494, %vm495
    %v497 = vsel %vm496, %v489, %v493
    %v498 = vand.u32 2147483647, %v488
    %vm499 = vcmp.eq.f32.partialorder %v498, 8.507059e+37
    %v500 = vand.u32 %v488, 2147483648
    %v501 = vor.u32 1.1754944e-38, %v500
    %v502 = vsel %vm499, %v501, %v497
    %v503 = vmul.f32 %v485, %v502
    %v504 = vrot.slane %v222, 1
    %v505 = vsel %vm95, %v223, %v504
    %v506 = vrot.slane %v224, 7
    %v507 = vsel %vm97, %v506, %v505
    %v508 = vrot.slane %v225, 6
    %v509 = vsel %vm99, %v508, %v507
    %v510 = vrot.slane %v226, 5
    %v511 = vsel %vm101, %v510, %v509
    %v512 = vrot.slane %v227, 4
    %v513 = vsel %vm103, %v512, %v511
    %v514 = vrot.slane %v228, 3
    %v515 = vsel %vm105, %v514, %v513
    %v516 = vrot.slane %v229, 2
    %v517 = vsel %vm107, %v516, %v515
    %518 = vrot.lane.b32.xlu0 %v517, 3
    %v519 = vpop.permute.xlu0 %518
    %v521 = vadd.f32 %v455, %v519
    %v522 = vadd.f32 %v521, %v38
    %v523 = vtanh.pop %v522
    %v524 = vmul.f32 %v523, 1.442695
    %v525 = vpow.pop %v524
    %527 = vrot.lane.b32.xlu0 %v525, 125
    %v528 = vpop.permute.xlu0 %527
    %v530 = vsel %vm51, %v528, 0.0
    %531 = vadd.xlane.f32.xlu0 %v530
    %v532 = vpop.xlane.xlu0 %531
    %v533 = vrcp.pop %v532
    %v534 = vmul.f32 %v532, %v533
    %v535 = vsub.f32 1.0, %v534
    %v536 = vmul.f32 %v533, %v535
    %v537 = vadd.f32 %v533, %v536
    %vm538 = vweird.f32 %v532
    %vm539 = vweird.f32 %v533
    %vm540 = vmor %vm538, %vm539
    %v541 = vsel %vm540, %v533, %v537
    %v542 = vand.u32 2147483647, %v532
    %vm543 = vcmp.eq.f32.partialorder %v542, 8.507059e+37
    %v544 = vand.u32 %v532, 2147483648
    %v545 = vor.u32 1.1754944e-38, %v544
    %v546 = vsel %vm543, %v545, %v541
    %v547 = vmul.f32 %v525, %v546
    %549 = vset.pattern.permute.xlu0 1
    %550 = vperm.xlu0 %549, %v503
    %v551 = vpop.permute.xlu0 %550
    %v553 = vmul.f32 %v551, %v366
    %v554 = vadd.f32 %v553, 0.0
    %555 = vset.pattern.permute.xlu0 2
    %556 = vperm.xlu0 %555, %v503
    %v557 = vpop.permute.xlu0 %556
    %v559 = vrot.slane %v21, 1
    %v560 = vsel %vm95, %v22, %v559
    %v561 = vsel %vm97, %v146, %v560
    %v562 = vsel %vm99, %v192, %v561
    %v563 = vrot.slane %v25, 5
    %v564 = vsel %vm101, %v563, %v562
    %v565 = vrot.slane %v26, 4
    %v566 = vsel %vm103, %v565, %v564
    %v567 = vrot.slane %v27, 3
    %v568 = vsel %vm105, %v567, %v566
    %v569 = vrot.slane %v28, 2
    %v570 = vsel %vm107, %v569, %v568
    %v572 = vmul.f32 %v557, %v570
    %v573 = vadd.f32 %v554, %v572
    %575 = vrot.lane.b32.xlu0 %v573, 3
    %v576 = vpop.permute.xlu0 %575
    %v578 = vmul.f32 %v547, %v576
    %580 = vrot.lane.b32.xlu0 %v578, 125
    %v581 = vpop.permute.xlu0 %580
    %v582 = vsel %vm51, %v581, 0
    %584 = vmatpush.msra.mxu0 0.0
    %585 = vmatpush.msra.mxu0 0.0
    %586 = vmatpush.msra.mxu0 0.0
    %587 = vmatpush.msra.mxu0 0.0
    %588 = vmatpush.msra.mxu0 0.0
    %589 = vmatpush.msra.mxu0 0.0
    %590 = vmatpush.msra.mxu0 0.0
    %591 = vmatpush.msra.mxu0 0.0
    %592 = vmatpush.msra.mxu0 0.0
    %593 = vmatpush.msra.mxu0 0.0
    %594 = vmatpush.msra.mxu0 0.0
    %595 = vmatpush.msra.mxu0 0.0
    %596 = vmatpush.msra.mxu0 0.0
    %597 = vmatpush.msra.mxu0 0.0
    %598 = vmatpush.msra.mxu0 0.0
    %599 = vmatpush.msra.mxu0 %v382
    %600 = vmatmul.f32.gmra.mxu0 %v582
    %v601 = vpop.f32.mrf.mxu0
    %v602 = vadd.f32 0.0, %v601
    %603 = vdwg.mxu0
    %v604 = vadd.f32 %v475, %v602
    %v605 = vadd.f32 %v604, %v406
    %v606 = vmul.f32 %v605, 0.5
    %v607 = vtanh.pop %v606
    %v608 = vadd.f32 %v607, 1.0
    %v609 = vmul.f32 %v608, 0.5
    %v610 = vtanh.pop %v605
    %v611 = vmul.f32 %v609, %v424
    %613 = vrot.lane.b32.xlu0 %v610, 96
    %v614 = vpop.permute.xlu0 %613
    %v616 = vmul.f32 %v609, %v614
    %618 = vrot.lane.b32.xlu0 %v616, 16
    %v619 = vpop.permute.xlu0 %618
    %v621 = vadd.f32 %v611, %v619
    %v622 = vtanh.pop %v621
    %624 = vrot.lane.b32.xlu0 %v622, 32
    %v625 = vpop.permute.xlu0 %624
    %v627 = vmul.f32 %v609, %v625
    %v628 = vadd.f32 %v431, %v627
    %630 = vrot.lane.b32.xlu0 %v627, 80
    %v631 = vpop.permute.xlu0 %630
    %v632 = vsel %vm230, %v631, 0
    %634 = vmatpush.msra.mxu0 0.0
    %635 = vmatpush.msra.mxu0 0.0
    %636 = vmatpush.msra.mxu0 0.0
    %637 = vmatpush.msra.mxu0 0.0
    %638 = vmatpush.msra.mxu0 0.0
    %639 = vmatpush.msra.mxu0 0.0
    %640 = vmatpush.msra.mxu0 0.0
    %641 = vmatpush.msra.mxu0 0.0
    %642 = vmatpush.msra.mxu0 0.0
    %643 = vmatpush.msra.mxu0 0.0
    %644 = vmatpush.msra.mxu0 0.0
    %645 = vmatpush.msra.mxu0 0.0
    %646 = vmatpush.msra.mxu0 0.0
    %647 = vmatpush.msra.mxu0 0.0
    %648 = vmatpush.msra.mxu0 %v31
    %649 = vmatpush.msra.mxu0 %v29
    %650 = vmatmul.f32.gmra.mxu0 %v632
    %v651 = vpop.f32.mrf.mxu0
    %v652 = vadd.f32 0.0, %v651
    %653 = vdwg.mxu0
    %654 = vmatpush.msra.mxu0 0.0
    %655 = vmatpush.msra.mxu0 0.0
    %656 = vmatpush.msra.mxu0 0.0
    %657 = vmatpush.msra.mxu0 0.0
    %658 = vmatpush.msra.mxu0 0.0
    %659 = vmatpush.msra.mxu0 0.0
    %660 = vmatpush.msra.mxu0 0.0
    %661 = vmatpush.msra.mxu0 0.0
    %662 = vmatpush.msra.mxu0 0.0
    %663 = vmatpush.msra.mxu0 0.0
    %664 = vmatpush.msra.mxu0 0.0
    %665 = vmatpush.msra.mxu0 0.0
    %666 = vmatpush.msra.mxu0 0.0
    %667 = vmatpush.msra.mxu0 0.0
    %668 = vmatpush.msra.mxu0 %v32
    %669 = vmatpush.msra.mxu0 %v30
    %670 = vmatmul.f32.gmra.mxu0 %v632
    %v671 = vpop.f32.mrf.mxu0
    %v672 = vadd.f32 0.0, %v671
    %673 = vdwg.mxu0
    %674 = vrot.lane.b32.xlu0 %v111, 126
    %v675 = vpop.permute.xlu0 %674
    %v677 = vadd.f32 %v652, %v675
    %v678 = vadd.f32 %v677, %v38
    %v679 = vtanh.pop %v678
    %v680 = vmul.f32 %v679, 1.442695
    %v681 = vpow.pop %v680
    %v682 = vsel %vm279, %v681, 0.0
    %683 = vadd.xlane.f32.xlu0 %v682
    %v684 = vpop.xlane.xlu0 %683
    %v685 = vrcp.pop %v684
    %v686 = vmul.f32 %v684, %v685
    %v687 = vsub.f32 1.0, %v686
    %v688 = vmul.f32 %v685, %v687
    %v689 = vadd.f32 %v685, %v688
    %vm690 = vweird.f32 %v684
    %vm691 = vweird.f32 %v685
    %vm692 = vmor %vm690, %vm691
    %v693 = vsel %vm692, %v685, %v689
    %v694 = vand.u32 2147483647, %v684
    %vm695 = vcmp.eq.f32.partialorder %v694, 8.507059e+37
    %v696 = vand.u32 %v684, 2147483648
    %v697 = vor.u32 1.1754944e-38, %v696
    %v698 = vsel %vm695, %v697, %v693
    %v699 = vmul.f32 %v681, %v698
    %v700 = vrot.slane %v222, 2
    %v701 = vrot.slane %v223, 1
    %v702 = vsel %vm95, %v701, %v700
    %v703 = vsel %vm97, %v224, %v702
    %v704 = vrot.slane %v225, 7
    %v705 = vsel %vm99, %v704, %v703
    %v706 = vrot.slane %v226, 6
    %v707 = vsel %vm101, %v706, %v705
    %v708 = vrot.slane %v227, 5
    %v709 = vsel %vm103, %v708, %v707
    %v710 = vrot.slane %v228, 4
    %v711 = vsel %vm105, %v710, %v709
    %v712 = vrot.slane %v229, 3
    %v713 = vsel %vm107, %v712, %v711
    %714 = vrot.lane.b32.xlu0 %v713, 3
    %v715 = vpop.permute.xlu0 %714
    %v717 = vadd.f32 %v652, %v715
    %v718 = vadd.f32 %v717, %v38
    %v719 = vtanh.pop %v718
    %v720 = vmul.f32 %v719, 1.442695
    %v721 = vpow.pop %v720
    %723 = vrot.lane.b32.xlu0 %v721, 125
    %v724 = vpop.permute.xlu0 %723
    %v726 = vsel %vm51, %v724, 0.0
    %727 = vadd.xlane.f32.xlu0 %v726
    %v728 = vpop.xlane.xlu0 %727
    %v729 = vrcp.pop %v728
    %v730 = vmul.f32 %v728, %v729
    %v731 = vsub.f32 1.0, %v730
    %v732 = vmul.f32 %v729, %v731
    %v733 = vadd.f32 %v729, %v732
    %vm734 = vweird.f32 %v728
    %vm735 = vweird.f32 %v729
    %vm736 = vmor %vm734, %vm735
    %v737 = vsel %vm736, %v729, %v733
    %v738 = vand.u32 2147483647, %v728
    %vm739 = vcmp.eq.f32.partialorder %v738, 8.507059e+37
    %v740 = vand.u32 %v728, 2147483648
    %v741 = vor.u32 1.1754944e-38, %v740
    %v742 = vsel %vm739, %v741, %v737
    %v743 = vmul.f32 %v721, %v742
    %745 = vset.pattern.permute.xlu0 0
    %746 = vperm.xlu0 %745, %v699
    %v747 = vpop.permute.xlu0 %746
    %v749 = vmul.f32 %v747, %v366
    %v750 = vadd.f32 %v749, 0.0
    %751 = vset.pattern.permute.xlu0 1
    %752 = vperm.xlu0 %751, %v699
    %v753 = vpop.permute.xlu0 %752
    %v755 = vmul.f32 %v753, %v570
    %v756 = vadd.f32 %v750, %v755
    %757 = vset.pattern.permute.xlu0 2
    %758 = vperm.xlu0 %757, %v699
    %v759 = vpop.permute.xlu0 %758
    %v761 = vrot.slane %v21, 2
    %v762 = vrot.slane %v22, 1
    %v763 = vsel %vm95, %v762, %v761
    %v764 = vsel %vm97, %v23, %v763
    %v765 = vsel %vm99, %v147, %v764
    %v766 = vsel %vm101, %v193, %v765
    %v767 = vrot.slane %v26, 5
    %v768 = vsel %vm103, %v767, %v766
    %v769 = vrot.slane %v27, 4
    %v770 = vsel %vm105, %v769, %v768
    %v771 = vrot.slane %v28, 3
    %v772 = vsel %vm107, %v771, %v770
    %v774 = vmul.f32 %v759, %v772
    %v775 = vadd.f32 %v756, %v774
    %777 = vrot.lane.b32.xlu0 %v775, 3
    %v778 = vpop.permute.xlu0 %777
    %v780 = vmul.f32 %v743, %v778
    %782 = vrot.lane.b32.xlu0 %v780, 125
    %v783 = vpop.permute.xlu0 %782
    %v784 = vsel %vm51, %v783, 0
    %786 = vmatpush.msra.mxu0 0.0
    %787 = vmatpush.msra.mxu0 0.0
    %788 = vmatpush.msra.mxu0 0.0
    %789 = vmatpush.msra.mxu0 0.0
    %790 = vmatpush.msra.mxu0 0.0
    %791 = vmatpush.msra.mxu0 0.0
    %792 = vmatpush.msra.mxu0 0.0
    %793 = vmatpush.msra.mxu0 0.0
    %794 = vmatpush.msra.mxu0 0.0
    %795 = vmatpush.msra.mxu0 0.0
    %796 = vmatpush.msra.mxu0 0.0
    %797 = vmatpush.msra.mxu0 0.0
    %798 = vmatpush.msra.mxu0 0.0
    %799 = vmatpush.msra.mxu0 0.0
    %800 = vmatpush.msra.mxu0 0.0
    %801 = vmatpush.msra.mxu0 %v382
    %802 = vmatmul.f32.gmra.mxu0 %v784
    %v803 = vpop.f32.mrf.mxu0
    %v804 = vadd.f32 0.0, %v803
    %805 = vdwg.mxu0
    %v806 = vadd.f32 %v672, %v804
    %v807 = vadd.f32 %v806, %v406
    %v808 = vmul.f32 %v807, 0.5
    %v809 = vtanh.pop %v808
    %v810 = vadd.f32 %v809, 1.0
    %v811 = vmul.f32 %v810, 0.5
    %v812 = vtanh.pop %v807
    %v813 = vmul.f32 %v811, %v621
    %815 = vrot.lane.b32.xlu0 %v812, 96
    %v816 = vpop.permute.xlu0 %815
    %v818 = vmul.f32 %v811, %v816
    %820 = vrot.lane.b32.xlu0 %v818, 16
    %v821 = vpop.permute.xlu0 %820
    %v823 = vadd.f32 %v813, %v821
    %v824 = vtanh.pop %v823
    %826 = vrot.lane.b32.xlu0 %v824, 32
    %v827 = vpop.permute.xlu0 %826
    %v829 = vmul.f32 %v811, %v827
    %v830 = vadd.f32 %v628, %v829
    %832 = vrot.lane.b32.xlu0 %v829, 80
    %v833 = vpop.permute.xlu0 %832
    %v834 = vsel %vm230, %v833, 0
    %836 = vmatpush.msra.mxu0 0.0
    %837 = vmatpush.msra.mxu0 0.0
    %838 = vmatpush.msra.mxu0 0.0
    %839 = vmatpush.msra.mxu0 0.0
    %840 = vmatpush.msra.mxu0 0.0
    %841 = vmatpush.msra.mxu0 0.0
    %842 = vmatpush.msra.mxu0 0.0
    %843 = vmatpush.msra.mxu0 0.0
    %844 = vmatpush.msra.mxu0 0.0
    %845 = vmatpush.msra.mxu0 0.0
    %846 = vmatpush.msra.mxu0 0.0
    %847 = vmatpush.msra.mxu0 0.0
    %848 = vmatpush.msra.mxu0 0.0
    %849 = vmatpush.msra.mxu0 0.0
    %850 = vmatpush.msra.mxu0 %v31
    %851 = vmatpush.msra.mxu0 %v29
    %852 = vmatmul.f32.gmra.mxu0 %v834
    %v853 = vpop.f32.mrf.mxu0
    %v854 = vadd.f32 0.0, %v853
    %855 = vdwg.mxu0
    %856 = vmatpush.msra.mxu0 0.0
    %857 = vmatpush.msra.mxu0 0.0
    %858 = vmatpush.msra.mxu0 0.0
    %859 = vmatpush.msra.mxu0 0.0
    %860 = vmatpush.msra.mxu0 0.0
    %861 = vmatpush.msra.mxu0 0.0
    %862 = vmatpush.msra.mxu0 0.0
    %863 = vmatpush.msra.mxu0 0.0
    %864 = vmatpush.msra.mxu0 0.0
    %865 = vmatpush.msra.mxu0 0.0
    %866 = vmatpush.msra.mxu0 0.0
    %867 = vmatpush.msra.mxu0 0.0
    %868 = vmatpush.msra.mxu0 0.0
    %869 = vmatpush.msra.mxu0 0.0
    %870 = vmatpush.msra.mxu0 %v32
    %871 = vmatpush.msra.mxu0 %v30
    %872 = vmatmul.f32.gmra.mxu0 %v834
    %v873 = vpop.f32.mrf.mxu0
    %v874 = vadd.f32 0.0, %v873
    %875 = vdwg.mxu0
    %876 = vrot.lane.b32.xlu0 %v111, 125
    %v877 = vpop.permute.xlu0 %876
    %v879 = vadd.f32 %v854, %v877
    %v880 = vadd.f32 %v879, %v38
    %v881 = vtanh.pop %v880
    %v882 = vmul.f32 %v881, 1.442695
    %v883 = vpow.pop %v882
    %v884 = vsel %vm279, %v883, 0.0
    %885 = vadd.xlane.f32.xlu0 %v884
    %v886 = vpop.xlane.xlu0 %885
    %v887 = vrcp.pop %v886
    %v888 = vmul.f32 %v886, %v887
    %v889 = vsub.f32 1.0, %v888
    %v890 = vmul.f32 %v887, %v889
    %v891 = vadd.f32 %v887, %v890
    %vm892 = vweird.f32 %v886
    %vm893 = vweird.f32 %v887
    %vm894 = vmor %vm892, %vm893
    %v895 = vsel %vm894, %v887, %v891
    %v896 = vand.u32 2147483647, %v886
    %vm897 = vcmp.eq.f32.partialorder %v896, 8.507059e+37
    %v898 = vand.u32 %v886, 2147483648
    %v899 = vor.u32 1.1754944e-38, %v898
    %v900 = vsel %vm897, %v899, %v895
    %v901 = vmul.f32 %v883, %v900
    %v902 = vrot.slane %v222, 3
    %v903 = vrot.slane %v223, 2
    %v904 = vsel %vm95, %v903, %v902
    %v905 = vrot.slane %v224, 1
    %v906 = vsel %vm97, %v905, %v904
    %v907 = vsel %vm99, %v225, %v906
    %v908 = vrot.slane %v226, 7
    %v909 = vsel %vm101, %v908, %v907
    %v910 = vrot.slane %v227, 6
    %v911 = vsel %vm103, %v910, %v909
    %v912 = vrot.slane %v228, 5
    %v913 = vsel %vm105, %v912, %v911
    %v914 = vrot.slane %v229, 4
    %v915 = vsel %vm107, %v914, %v913
    %916 = vrot.lane.b32.xlu0 %v915, 3
    %v917 = vpop.permute.xlu0 %916
    %v919 = vadd.f32 %v854, %v917
    %v920 = vadd.f32 %v919, %v38
    %v921 = vtanh.pop %v920
    %v922 = vmul.f32 %v921, 1.442695
    %v923 = vpow.pop %v922
    %925 = vrot.lane.b32.xlu0 %v923, 125
    %v926 = vpop.permute.xlu0 %925
    %v928 = vsel %vm51, %v926, 0.0
    %929 = vadd.xlane.f32.xlu0 %v928
    %v930 = vpop.xlane.xlu0 %929
    %v931 = vrcp.pop %v930
    %v932 = vmul.f32 %v930, %v931
    %v933 = vsub.f32 1.0, %v932
    %v934 = vmul.f32 %v931, %v933
    %v935 = vadd.f32 %v931, %v934
    %vm936 = vweird.f32 %v930
    %vm937 = vweird.f32 %v931
    %vm938 = vmor %vm936, %vm937
    %v939 = vsel %vm938, %v931, %v935
    %v940 = vand.u32 2147483647, %v930
    %vm941 = vcmp.eq.f32.partialorder %v940, 8.507059e+37
    %v942 = vand.u32 %v930, 2147483648
    %v943 = vor.u32 1.1754944e-38, %v942
    %v944 = vsel %vm941, %v943, %v939
    %v945 = vmul.f32 %v923, %v944
    %947 = vset.pattern.permute.xlu0 0
    %948 = vperm.xlu0 %947, %v901
    %v949 = vpop.permute.xlu0 %948
    %v951 = vmul.f32 %v949, %v570
    %v952 = vadd.f32 %v951, 0.0
    %953 = vset.pattern.permute.xlu0 1
    %954 = vperm.xlu0 %953, %v901
    %v955 = vpop.permute.xlu0 %954
    %v957 = vmul.f32 %v955, %v772
    %v958 = vadd.f32 %v952, %v957
    %959 = vset.pattern.permute.xlu0 2
    %960 = vperm.xlu0 %959, %v901
    %v961 = vpop.permute.xlu0 %960
    %v963 = vrot.slane %v21, 3
    %v964 = vrot.slane %v22, 2
    %v965 = vsel %vm95, %v964, %v963
    %v966 = vrot.slane %v23, 1
    %v967 = vsel %vm97, %v966, %v965
    %v968 = vsel %vm99, %v24, %v967
    %v969 = vsel %vm101, %v148, %v968
    %v970 = vsel %vm103, %v194, %v969
    %v971 = vrot.slane %v27, 5
    %v972 = vsel %vm105, %v971, %v970
    %v973 = vrot.slane %v28, 4
    %v974 = vsel %vm107, %v973, %v972
    %v976 = vmul.f32 %v961, %v974
    %v977 = vadd.f32 %v958, %v976
    %979 = vrot.lane.b32.xlu0 %v977, 3
    %v980 = vpop.permute.xlu0 %979
    %v982 = vmul.f32 %v945, %v980
    %984 = vrot.lane.b32.xlu0 %v982, 125
    %v985 = vpop.permute.xlu0 %984
    %v986 = vsel %vm51, %v985, 0
    %988 = vmatpush.msra.mxu0 0.0
    %989 = vmatpush.msra.mxu0 0.0
    %990 = vmatpush.msra.mxu0 0.0
    %991 = vmatpush.msra.mxu0 0.0
    %992 = vmatpush.msra.mxu0 0.0
    %993 = vmatpush.msra.mxu0 0.0
    %994 = vmatpush.msra.mxu0 0.0
    %995 = vmatpush.msra.mxu0 0.0
    %996 = vmatpush.msra.mxu0 0.0
    %997 = vmatpush.msra.mxu0 0.0
    %998 = vmatpush.msra.mxu0 0.0
    %999 = vmatpush.msra.mxu0 0.0
    %1000 = vmatpush.msra.mxu0 0.0
    %1001 = vmatpush.msra.mxu0 0.0
    %1002 = vmatpush.msra.mxu0 0.0
    %1003 = vmatpush.msra.mxu0 %v382
    %1004 = vmatmul.f32.gmra.mxu0 %v986
    %v1005 = vpop.f32.mrf.mxu0
    %v1006 = vadd.f32 0.0, %v1005
    %1007 = vdwg.mxu0
    %v1008 = vadd.f32 %v874, %v1006
    %v1009 = vadd.f32 %v1008, %v406
    %v1010 = vmul.f32 %v1009, 0.5
    %v1011 = vtanh.pop %v1010
    %v1012 = vadd.f32 %v1011, 1.0
    %v1013 = vmul.f32 %v1012, 0.5
    %v1014 = vtanh.pop %v1009
    %v1015 = vmul.f32 %v1013, %v823
    %1017 = vrot.lane.b32.xlu0 %v1014, 96
    %v1018 = vpop.permute.xlu0 %1017
    %v1020 = vmul.f32 %v1013, %v1018
    %1022 = vrot.lane.b32.xlu0 %v1020, 16
    %v1023 = vpop.permute.xlu0 %1022
    %v1025 = vadd.f32 %v1015, %v1023
    %v1026 = vtanh.pop %v1025
    %1028 = vrot.lane.b32.xlu0 %v1026, 32
    %v1029 = vpop.permute.xlu0 %1028
    %v1031 = vmul.f32 %v1013, %v1029
    %v1032 = vadd.f32 %v830, %v1031
    %1034 = vrot.lane.b32.xlu0 %v1031, 80
    %v1035 = vpop.permute.xlu0 %1034
    %v1036 = vsel %vm230, %v1035, 0
    %1038 = vmatpush.msra.mxu0 0.0
    %1039 = vmatpush.msra.mxu0 0.0
    %1040 = vmatpush.msra.mxu0 0.0
    %1041 = vmatpush.msra.mxu0 0.0
    %1042 = vmatpush.msra.mxu0 0.0
    %1043 = vmatpush.msra.mxu0 0.0
    %1044 = vmatpush.msra.mxu0 0.0
    %1045 = vmatpush.msra.mxu0 0.0
    %1046 = vmatpush.msra.mxu0 0.0
    %1047 = vmatpush.msra.mxu0 0.0
    %1048 = vmatpush.msra.mxu0 0.0
    %1049 = vmatpush.msra.mxu0 0.0
    %1050 = vmatpush.msra.mxu0 0.0
    %1051 = vmatpush.msra.mxu0 0.0
    %1052 = vmatpush.msra.mxu0 %v31
    %1053 = vmatpush.msra.mxu0 %v29
    %1054 = vmatmul.f32.gmra.mxu0 %v1036
    %v1055 = vpop.f32.mrf.mxu0
    %v1056 = vadd.f32 0.0, %v1055
    %1057 = vdwg.mxu0
    %1058 = vmatpush.msra.mxu0 0.0
    %1059 = vmatpush.msra.mxu0 0.0
    %1060 = vmatpush.msra.mxu0 0.0
    %1061 = vmatpush.msra.mxu0 0.0
    %1062 = vmatpush.msra.mxu0 0.0
    %1063 = vmatpush.msra.mxu0 0.0
    %1064 = vmatpush.msra.mxu0 0.0
    %1065 = vmatpush.msra.mxu0 0.0
    %1066 = vmatpush.msra.mxu0 0.0
    %1067 = vmatpush.msra.mxu0 0.0
    %1068 = vmatpush.msra.mxu0 0.0
    %1069 = vmatpush.msra.mxu0 0.0
    %1070 = vmatpush.msra.mxu0 0.0
    %1071 = vmatpush.msra.mxu0 0.0
    %1072 = vmatpush.msra.mxu0 %v32
    %1073 = vmatpush.msra.mxu0 %v30
    %1074 = vmatmul.f32.gmra.mxu0 %v1036
    %v1075 = vpop.f32.mrf.mxu0
    %v1076 = vadd.f32 0.0, %v1075
    %1077 = vdwg.mxu0
    %1078 = vrot.lane.b32.xlu0 %v111, 124
    %v1079 = vpop.permute.xlu0 %1078
    %v1081 = vadd.f32 %v1056, %v1079
    %v1082 = vadd.f32 %v1081, %v38
    %v1083 = vtanh.pop %v1082
    %v1084 = vmul.f32 %v1083, 1.442695
    %v1085 = vpow.pop %v1084
    %v1086 = vsel %vm279, %v1085, 0.0
    %1087 = vadd.xlane.f32.xlu0 %v1086
    %v1088 = vpop.xlane.xlu0 %1087
    %v1089 = vrcp.pop %v1088
    %v1090 = vmul.f32 %v1088, %v1089
    %v1091 = vsub.f32 1.0, %v1090
    %v1092 = vmul.f32 %v1089, %v1091
    %v1093 = vadd.f32 %v1089, %v1092
    %vm1094 = vweird.f32 %v1088
    %vm1095 = vweird.f32 %v1089
    %vm1096 = vmor %vm1094, %vm1095
    %v1097 = vsel %vm1096, %v1089, %v1093
    %v1098 = vand.u32 2147483647, %v1088
    %vm1099 = vcmp.eq.f32.partialorder %v1098, 8.507059e+37
    %v1100 = vand.u32 %v1088, 2147483648
    %v1101 = vor.u32 1.1754944e-38, %v1100
    %v1102 = vsel %vm1099, %v1101, %v1097
    %v1103 = vmul.f32 %v1085, %v1102
    %v1104 = vrot.slane %v222, 4
    %v1105 = vrot.slane %v223, 3
    %v1106 = vsel %vm95, %v1105, %v1104
    %v1107 = vrot.slane %v224, 2
    %v1108 = vsel %vm97, %v1107, %v1106
    %v1109 = vrot.slane %v225, 1
    %v1110 = vsel %vm99, %v1109, %v1108
    %v1111 = vsel %vm101, %v226, %v1110
    %v1112 = vrot.slane %v227, 7
    %v1113 = vsel %vm103, %v1112, %v1111
    %v1114 = vrot.slane %v228, 6
    %v1115 = vsel %vm105, %v1114, %v1113
    %v1116 = vrot.slane %v229, 5
    %v1117 = vsel %vm107, %v1116, %v1115
    %1118 = vrot.lane.b32.xlu0 %v1117, 3
    %v1119 = vpop.permute.xlu0 %1118
    %v1121 = vadd.f32 %v1056, %v1119
    %v1122 = vadd.f32 %v1121, %v38
    %v1123 = vtanh.pop %v1122
    %v1124 = vmul.f32 %v1123, 1.442695
    %v1125 = vpow.pop %v1124
    %1127 = vrot.lane.b32.xlu0 %v1125, 125
    %v1128 = vpop.permute.xlu0 %1127
    %v1130 = vsel %vm51, %v1128, 0.0
    %1131 = vadd.xlane.f32.xlu0 %v1130
    %v1132 = vpop.xlane.xlu0 %1131
    %v1133 = vrcp.pop %v1132
    %v1134 = vmul.f32 %v1132, %v1133
    %v1135 = vsub.f32 1.0, %v1134
    %v1136 = vmul.f32 %v1133, %v1135
    %v1137 = vadd.f32 %v1133, %v1136
    %vm1138 = vweird.f32 %v1132
    %vm1139 = vweird.f32 %v1133
    %vm1140 = vmor %vm1138, %vm1139
    %v1141 = vsel %vm1140, %v1133, %v1137
    %v1142 = vand.u32 2147483647, %v1132
    %vm1143 = vcmp.eq.f32.partialorder %v1142, 8.507059e+37
    %v1144 = vand.u32 %v1132, 2147483648
    %v1145 = vor.u32 1.1754944e-38, %v1144
    %v1146 = vsel %vm1143, %v1145, %v1141
    %v1147 = vmul.f32 %v1125, %v1146
    %1149 = vset.pattern.permute.xlu0 0
    %1150 = vperm.xlu0 %1149, %v1103
    %v1151 = vpop.permute.xlu0 %1150
    %v1153 = vmul.f32 %v1151, %v772
    %v1154 = vadd.f32 %v1153, 0.0
    %1155 = vset.pattern.permute.xlu0 1
    %1156 = vperm.xlu0 %1155, %v1103
    %v1157 = vpop.permute.xlu0 %1156
    %v1159 = vmul.f32 %v1157, %v974
    %v1160 = vadd.f32 %v1154, %v1159
    %1161 = vset.pattern.permute.xlu0 2
    %1162 = vperm.xlu0 %1161, %v1103
    %v1163 = vpop.permute.xlu0 %1162
    %v1165 = vrot.slane %v21, 4
    %v1166 = vrot.slane %v22, 3
    %v1167 = vsel %vm95, %v1166, %v1165
    %v1168 = vrot.slane %v23, 2
    %v1169 = vsel %vm97, %v1168, %v1167
    %v1170 = vrot.slane %v24, 1
    %v1171 = vsel %vm99, %v1170, %v1169
    %v1172 = vsel %vm101, %v25, %v1171
    %v1173 = vsel %vm103, %v149, %v1172
    %v1174 = vsel %vm105, %v195, %v1173
    %v1175 = vrot.slane %v28, 5
    %v1176 = vsel %vm107, %v1175, %v1174
    %v1178 = vmul.f32 %v1163, %v1176
    %v1179 = vadd.f32 %v1160, %v1178
    %1181 = vrot.lane.b32.xlu0 %v1179, 3
    %v1182 = vpop.permute.xlu0 %1181
    %v1184 = vmul.f32 %v1147, %v1182
    %1186 = vrot.lane.b32.xlu0 %v1184, 125
    %v1187 = vpop.permute.xlu0 %1186
    %v1188 = vsel %vm51, %v1187, 0
    %1190 = vmatpush.msra.mxu0 0.0
    %1191 = vmatpush.msra.mxu0 0.0
    %1192 = vmatpush.msra.mxu0 0.0
    %1193 = vmatpush.msra.mxu0 0.0
    %1194 = vmatpush.msra.mxu0 0.0
    %1195 = vmatpush.msra.mxu0 0.0
    %1196 = vmatpush.msra.mxu0 0.0
    %1197 = vmatpush.msra.mxu0 0.0
    %1198 = vmatpush.msra.mxu0 0.0
    %1199 = vmatpush.msra.mxu0 0.0
    %1200 = vmatpush.msra.mxu0 0.0
    %1201 = vmatpush.msra.mxu0 0.0
    %1202 = vmatpush.msra.mxu0 0.0
    %1203 = vmatpush.msra.mxu0 0.0
    %1204 = vmatpush.msra.mxu0 0.0
    %1205 = vmatpush.msra.mxu0 %v382
    %1206 = vmatmul.f32.gmra.mxu0 %v1188
    %v1207 = vpop.f32.mrf.mxu0
    %v1208 = vadd.f32 0.0, %v1207
    %1209 = vdwg.mxu0
    %v1210 = vadd.f32 %v1076, %v1208
    %v1211 = vadd.f32 %v1210, %v406
    %v1212 = vmul.f32 %v1211, 0.5
    %v1213 = vtanh.pop %v1212
    %v1214 = vadd.f32 %v1213, 1.0
    %v1215 = vmul.f32 %v1214, 0.5
    %v1216 = vtanh.pop %v1211
    %v1217 = vmul.f32 %v1215, %v1025
    %1219 = vrot.lane.b32.xlu0 %v1216, 96
    %v1220 = vpop.permute.xlu0 %1219
    %v1222 = vmul.f32 %v1215, %v1220
    %1224 = vrot.lane.b32.xlu0 %v1222, 16
    %v1225 = vpop.permute.xlu0 %1224
    %v1227 = vadd.f32 %v1217, %v1225
    %v1228 = vtanh.pop %v1227
    %1230 = vrot.lane.b32.xlu0 %v1228, 32
    %v1231 = vpop.permute.xlu0 %1230
    %v1233 = vmul.f32 %v1215, %v1231
    %v1234 = vadd.f32 %v1032, %v1233
    %1236 = vrot.lane.b32.xlu0 %v1233, 80
    %v1237 = vpop.permute.xlu0 %1236
    %v1238 = vsel %vm230, %v1237, 0
    %1240 = vmatpush.msra.mxu0 0.0
    %1241 = vmatpush.msra.mxu0 0.0
    %1242 = vmatpush.msra.mxu0 0.0
    %1243 = vmatpush.msra.mxu0 0.0
    %1244 = vmatpush.msra.mxu0 0.0
    %1245 = vmatpush.msra.mxu0 0.0
    %1246 = vmatpush.msra.mxu0 0.0
    %1247 = vmatpush.msra.mxu0 0.0
    %1248 = vmatpush.msra.mxu0 0.0
    %1249 = vmatpush.msra.mxu0 0.0
    %1250 = vmatpush.msra.mxu0 0.0
    %1251 = vmatpush.msra.mxu0 0.0
    %1252 = vmatpush.msra.mxu0 0.0
    %1253 = vmatpush.msra.mxu0 0.0
    %1254 = vmatpush.msra.mxu0 %v31
    %1255 = vmatpush.msra.mxu0 %v29
    %1256 = vmatmul.f32.gmra.mxu0 %v1238
    %v1257 = vpop.f32.mrf.mxu0
    %v1258 = vadd.f32 0.0, %v1257
    %1259 = vdwg.mxu0
    %1260 = vmatpush.msra.mxu0 0.0
    %1261 = vmatpush.msra.mxu0 0.0
    %1262 = vmatpush.msra.mxu0 0.0
    %1263 = vmatpush.msra.mxu0 0.0
    %1264 = vmatpush.msra.mxu0 0.0
    %1265 = vmatpush.msra.mxu0 0.0
    %1266 = vmatpush.msra.mxu0 0.0
    %1267 = vmatpush.msra.mxu0 0.0
    %1268 = vmatpush.msra.mxu0 0.0
    %1269 = vmatpush.msra.mxu0 0.0
    %1270 = vmatpush.msra.mxu0 0.0
    %1271 = vmatpush.msra.mxu0 0.0
    %1272 = vmatpush.msra.mxu0 0.0
    %1273 = vmatpush.msra.mxu0 0.0
    %1274 = vmatpush.msra.mxu0 %v32
    %1275 = vmatpush.msra.mxu0 %v30
    %1276 = vmatmul.f32.gmra.mxu0 %v1238
    %v1277 = vpop.f32.mrf.mxu0
    %v1278 = vadd.f32 0.0, %v1277
    %1279 = vdwg.mxu0
    %1280 = vrot.lane.b32.xlu0 %v111, 123
    %v1281 = vpop.permute.xlu0 %1280
    %v1283 = vadd.f32 %v1258, %v1281
    %v1284 = vadd.f32 %v1283, %v38
    %v1285 = vtanh.pop %v1284
    %v1286 = vmul.f32 %v1285, 1.442695
    %v1287 = vpow.pop %v1286
    %v1288 = vsel %vm279, %v1287, 0.0
    %1289 = vadd.xlane.f32.xlu0 %v1288
    %v1290 = vpop.xlane.xlu0 %1289
    %v1291 = vrcp.pop %v1290
    %v1292 = vmul.f32 %v1290, %v1291
    %v1293 = vsub.f32 1.0, %v1292
    %v1294 = vmul.f32 %v1291, %v1293
    %v1295 = vadd.f32 %v1291, %v1294
    %vm1296 = vweird.f32 %v1290
    %vm1297 = vweird.f32 %v1291
    %vm1298 = vmor %vm1296, %vm1297
    %v1299 = vsel %vm1298, %v1291, %v1295
    %v1300 = vand.u32 2147483647, %v1290
    %vm1301 = vcmp.eq.f32.partialorder %v1300, 8.507059e+37
    %v1302 = vand.u32 %v1290, 2147483648
    %v1303 = vor.u32 1.1754944e-38, %v1302
    %v1304 = vsel %vm1301, %v1303, %v1299
    %v1305 = vmul.f32 %v1287, %v1304
    %v1306 = vrot.slane %v222, 5
    %v1307 = vrot.slane %v223, 4
    %v1308 = vsel %vm95, %v1307, %v1306
    %v1309 = vrot.slane %v224, 3
    %v1310 = vsel %vm97, %v1309, %v1308
    %v1311 = vrot.slane %v225, 2
    %v1312 = vsel %vm99, %v1311, %v1310
    %v1313 = vrot.slane %v226, 1
    %v1314 = vsel %vm101, %v1313, %v1312
    %v1315 = vsel %vm103, %v227, %v1314
    %v1316 = vrot.slane %v228, 7
    %v1317 = vsel %vm105, %v1316, %v1315
    %v1318 = vrot.slane %v229, 6
    %v1319 = vsel %vm107, %v1318, %v1317
    %1320 = vrot.lane.b32.xlu0 %v1319, 3
    %v1321 = vpop.permute.xlu0 %1320
    %v1323 = vadd.f32 %v1258, %v1321
    %v1324 = vadd.f32 %v1323, %v38
    %v1325 = vtanh.pop %v1324
    %v1326 = vmul.f32 %v1325, 1.442695
    %v1327 = vpow.pop %v1326
    %1329 = vrot.lane.b32.xlu0 %v1327, 125
    %v1330 = vpop.permute.xlu0 %1329
    %v1332 = vsel %vm51, %v1330, 0.0
    %1333 = vadd.xlane.f32.xlu0 %v1332
    %v1334 = vpop.xlane.xlu0 %1333
    %v1335 = vrcp.pop %v1334
    %v1336 = vmul.f32 %v1334, %v1335
    %v1337 = vsub.f32 1.0, %v1336
    %v1338 = vmul.f32 %v1335, %v1337
    %v1339 = vadd.f32 %v1335, %v1338
    %vm1340 = vweird.f32 %v1334
    %vm1341 = vweird.f32 %v1335
    %vm1342 = vmor %vm1340, %vm1341
    %v1343 = vsel %vm1342, %v1335, %v1339
    %v1344 = vand.u32 2147483647, %v1334
    %vm1345 = vcmp.eq.f32.partialorder %v1344, 8.507059e+37
    %v1346 = vand.u32 %v1334, 2147483648
    %v1347 = vor.u32 1.1754944e-38, %v1346
    %v1348 = vsel %vm1345, %v1347, %v1343
    %v1349 = vmul.f32 %v1327, %v1348
    %1351 = vset.pattern.permute.xlu0 0
    %1352 = vperm.xlu0 %1351, %v1305
    %v1353 = vpop.permute.xlu0 %1352
    %v1355 = vmul.f32 %v1353, %v974
    %v1356 = vadd.f32 %v1355, 0.0
    %1357 = vset.pattern.permute.xlu0 1
    %1358 = vperm.xlu0 %1357, %v1305
    %v1359 = vpop.permute.xlu0 %1358
    %v1361 = vmul.f32 %v1359, %v1176
    %v1362 = vadd.f32 %v1356, %v1361
    %1363 = vset.pattern.permute.xlu0 2
    %1364 = vperm.xlu0 %1363, %v1305
    %v1365 = vpop.permute.xlu0 %1364
    %v1367 = vrot.slane %v21, 5
    %v1368 = vrot.slane %v22, 4
    %v1369 = vsel %vm95, %v1368, %v1367
    %v1370 = vrot.slane %v23, 3
    %v1371 = vsel %vm97, %v1370, %v1369
    %v1372 = vrot.slane %v24, 2
    %v1373 = vsel %vm99, %v1372, %v1371
    %v1374 = vrot.slane %v25, 1
    %v1375 = vsel %vm101, %v1374, %v1373
    %v1376 = vsel %vm103, %v26, %v1375
    %v1377 = vsel %vm105, %v150, %v1376
    %v1378 = vsel %vm107, %v196, %v1377
    %v1380 = vmul.f32 %v1365, %v1378
    %v1381 = vadd.f32 %v1362, %v1380
    %1383 = vrot.lane.b32.xlu0 %v1381, 3
    %v1384 = vpop.permute.xlu0 %1383
    %v1386 = vmul.f32 %v1349, %v1384
    %1388 = vrot.lane.b32.xlu0 %v1386, 125
    %v1389 = vpop.permute.xlu0 %1388
    %v1390 = vsel %vm51, %v1389, 0
    %1392 = vmatpush.msra.mxu0 0.0
    %1393 = vmatpush.msra.mxu0 0.0
    %1394 = vmatpush.msra.mxu0 0.0
    %1395 = vmatpush.msra.mxu0 0.0
    %1396 = vmatpush.msra.mxu0 0.0
    %1397 = vmatpush.msra.mxu0 0.0
    %1398 = vmatpush.msra.mxu0 0.0
    %1399 = vmatpush.msra.mxu0 0.0
    %1400 = vmatpush.msra.mxu0 0.0
    %1401 = vmatpush.msra.mxu0 0.0
    %1402 = vmatpush.msra.mxu0 0.0
    %1403 = vmatpush.msra.mxu0 0.0
    %1404 = vmatpush.msra.mxu0 0.0
    %1405 = vmatpush.msra.mxu0 0.0
    %1406 = vmatpush.msra.mxu0 0.0
    %1407 = vmatpush.msra.mxu0 %v382
    %1408 = vmatmul.f32.gmra.mxu0 %v1390
    %v1409 = vpop.f32.mrf.mxu0
    %v1410 = vadd.f32 0.0, %v1409
    %1411 = vdwg.mxu0
    %v1412 = vadd.f32 %v1278, %v1410
    %v1413 = vadd.f32 %v1412, %v406
    %v1414 = vmul.f32 %v1413, 0.5
    %v1415 = vtanh.pop %v1414
    %v1416 = vadd.f32 %v1415, 1.0
    %v1417 = vmul.f32 %v1416, 0.5
    %v1418 = vtanh.pop %v1413
    %v1419 = vmul.f32 %v1417, %v1227
    %1421 = vrot.lane.b32.xlu0 %v1418, 96
    %v1422 = vpop.permute.xlu0 %1421
    %v1424 = vmul.f32 %v1417, %v1422
    %1426 = vrot.lane.b32.xlu0 %v1424, 16
    %v1427 = vpop.permute.xlu0 %1426
    %v1429 = vadd.f32 %v1419, %v1427
    %v1430 = vtanh.pop %v1429
    %1432 = vrot.lane.b32.xlu0 %v1430, 32
    %v1433 = vpop.permute.xlu0 %1432
    %v1435 = vmul.f32 %v1417, %v1433
    %v1436 = vadd.f32 %v1234, %v1435
    %1438 = vrot.lane.b32.xlu0 %v1435, 80
    %v1439 = vpop.permute.xlu0 %1438
    %v1440 = vsel %vm230, %v1439, 0
    %1442 = vmatpush.msra.mxu0 0.0
    %1443 = vmatpush.msra.mxu0 0.0
    %1444 = vmatpush.msra.mxu0 0.0
    %1445 = vmatpush.msra.mxu0 0.0
    %1446 = vmatpush.msra.mxu0 0.0
    %1447 = vmatpush.msra.mxu0 0.0
    %1448 = vmatpush.msra.mxu0 0.0
    %1449 = vmatpush.msra.mxu0 0.0
    %1450 = vmatpush.msra.mxu0 0.0
    %1451 = vmatpush.msra.mxu0 0.0
    %1452 = vmatpush.msra.mxu0 0.0
    %1453 = vmatpush.msra.mxu0 0.0
    %1454 = vmatpush.msra.mxu0 0.0
    %1455 = vmatpush.msra.mxu0 0.0
    %1456 = vmatpush.msra.mxu0 %v31
    %1457 = vmatpush.msra.mxu0 %v29
    %1458 = vmatmul.f32.gmra.mxu0 %v1440
    %v1459 = vpop.f32.mrf.mxu0
    %v1460 = vadd.f32 0.0, %v1459
    %1461 = vdwg.mxu0
    %1462 = vmatpush.msra.mxu0 0.0
    %1463 = vmatpush.msra.mxu0 0.0
    %1464 = vmatpush.msra.mxu0 0.0
    %1465 = vmatpush.msra.mxu0 0.0
    %1466 = vmatpush.msra.mxu0 0.0
    %1467 = vmatpush.msra.mxu0 0.0
    %1468 = vmatpush.msra.mxu0 0.0
    %1469 = vmatpush.msra.mxu0 0.0
    %1470 = vmatpush.msra.mxu0 0.0
    %1471 = vmatpush.msra.mxu0 0.0
    %1472 = vmatpush.msra.mxu0 0.0
    %1473 = vmatpush.msra.mxu0 0.0
    %1474 = vmatpush.msra.mxu0 0.0
    %1475 = vmatpush.msra.mxu0 0.0
    %1476 = vmatpush.msra.mxu0 %v32
    %1477 = vmatpush.msra.mxu0 %v30
    %1478 = vmatmul.f32.gmra.mxu0 %v1440
    %v1479 = vpop.f32.mrf.mxu0
    %v1480 = vadd.f32 0.0, %v1479
    %1481 = vdwg.mxu0
    %1482 = vrot.lane.b32.xlu0 %v111, 122
    %v1483 = vpop.permute.xlu0 %1482
    %v1485 = vadd.f32 %v1460, %v1483
    %v1486 = vadd.f32 %v1485, %v38
    %v1487 = vtanh.pop %v1486
    %v1488 = vmul.f32 %v1487, 1.442695
    %v1489 = vpow.pop %v1488
    %v1490 = vsel %vm279, %v1489, 0.0
    %1491 = vadd.xlane.f32.xlu0 %v1490
    %v1492 = vpop.xlane.xlu0 %1491
    %v1493 = vrcp.pop %v1492
    %v1494 = vmul.f32 %v1492, %v1493
    %v1495 = vsub.f32 1.0, %v1494
    %v1496 = vmul.f32 %v1493, %v1495
    %v1497 = vadd.f32 %v1493, %v1496
    %vm1498 = vweird.f32 %v1492
    %vm1499 = vweird.f32 %v1493
    %vm1500 = vmor %vm1498, %vm1499
    %v1501 = vsel %vm1500, %v1493, %v1497
    %v1502 = vand.u32 2147483647, %v1492
    %vm1503 = vcmp.eq.f32.partialorder %v1502, 8.507059e+37
    %v1504 = vand.u32 %v1492, 2147483648
    %v1505 = vor.u32 1.1754944e-38, %v1504
    %v1506 = vsel %vm1503, %v1505, %v1501
    %v1507 = vmul.f32 %v1489, %v1506
    %v1508 = vrot.slane %v222, 6
    %v1509 = vrot.slane %v223, 5
    %v1510 = vsel %vm95, %v1509, %v1508
    %v1511 = vrot.slane %v224, 4
    %v1512 = vsel %vm97, %v1511, %v1510
    %v1513 = vrot.slane %v225, 3
    %v1514 = vsel %vm99, %v1513, %v1512
    %v1515 = vrot.slane %v226, 2
    %v1516 = vsel %vm101, %v1515, %v1514
    %v1517 = vrot.slane %v227, 1
    %v1518 = vsel %vm103, %v1517, %v1516
    %v1519 = vsel %vm105, %v228, %v1518
    %v1520 = vrot.slane %v229, 7
    %v1521 = vsel %vm107, %v1520, %v1519
    %1522 = vrot.lane.b32.xlu0 %v1521, 3
    %v1523 = vpop.permute.xlu0 %1522
    %v1525 = vadd.f32 %v1460, %v1523
    %v1526 = vadd.f32 %v1525, %v38
    %v1527 = vtanh.pop %v1526
    %v1528 = vmul.f32 %v1527, 1.442695
    %v1529 = vpow.pop %v1528
    %1531 = vrot.lane.b32.xlu0 %v1529, 125
    %v1532 = vpop.permute.xlu0 %1531
    %v1534 = vsel %vm51, %v1532, 0.0
    %1535 = vadd.xlane.f32.xlu0 %v1534
    %v1536 = vpop.xlane.xlu0 %1535
    %v1537 = vrcp.pop %v1536
    %v1538 = vmul.f32 %v1536, %v1537
    %v1539 = vsub.f32 1.0, %v1538
    %v1540 = vmul.f32 %v1537, %v1539
    %v1541 = vadd.f32 %v1537, %v1540
    %vm1542 = vweird.f32 %v1536
    %vm1543 = vweird.f32 %v1537
    %vm1544 = vmor %vm1542, %vm1543
    %v1545 = vsel %vm1544, %v1537, %v1541
    %v1546 = vand.u32 2147483647, %v1536
    %vm1547 = vcmp.eq.f32.partialorder %v1546, 8.507059e+37
    %v1548 = vand.u32 %v1536, 2147483648
    %v1549 = vor.u32 1.1754944e-38, %v1548
    %v1550 = vsel %vm1547, %v1549, %v1545
    %v1551 = vmul.f32 %v1529, %v1550
    %1553 = vset.pattern.permute.xlu0 0
    %1554 = vperm.xlu0 %1553, %v1507
    %v1555 = vpop.permute.xlu0 %1554
    %v1557 = vmul.f32 %v1555, %v1176
    %v1558 = vadd.f32 %v1557, 0.0
    %1559 = vset.pattern.permute.xlu0 1
    %1560 = vperm.xlu0 %1559, %v1507
    %v1561 = vpop.permute.xlu0 %1560
    %v1563 = vmul.f32 %v1561, %v1378
    %v1564 = vadd.f32 %v1558, %v1563
    %1565 = vset.pattern.permute.xlu0 2
    %1566 = vperm.xlu0 %1565, %v1507
    %v1567 = vpop.permute.xlu0 %1566
    %v1569 = vrot.slane %v22, 5
    %v1570 = vsel %vm95, %v1569, %v189
    %v1571 = vrot.slane %v23, 4
    %v1572 = vsel %vm97, %v1571, %v1570
    %v1573 = vrot.slane %v24, 3
    %v1574 = vsel %vm99, %v1573, %v1572
    %v1575 = vrot.slane %v25, 2
    %v1576 = vsel %vm101, %v1575, %v1574
    %v1577 = vrot.slane %v26, 1
    %v1578 = vsel %vm103, %v1577, %v1576
    %v1579 = vsel %vm105, %v27, %v1578
    %v1580 = vsel %vm107, %v151, %v1579
    %v1582 = vmul.f32 %v1567, %v1580
    %v1583 = vadd.f32 %v1564, %v1582
    %1585 = vrot.lane.b32.xlu0 %v1583, 3
    %v1586 = vpop.permute.xlu0 %1585
    %v1588 = vmul.f32 %v1551, %v1586
    %1590 = vrot.lane.b32.xlu0 %v1588, 125
    %v1591 = vpop.permute.xlu0 %1590
    %v1592 = vsel %vm51, %v1591, 0
    %1594 = vmatpush.msra.mxu0 0.0
    %1595 = vmatpush.msra.mxu0 0.0
    %1596 = vmatpush.msra.mxu0 0.0
    %1597 = vmatpush.msra.mxu0 0.0
    %1598 = vmatpush.msra.mxu0 0.0
    %1599 = vmatpush.msra.mxu0 0.0
    %1600 = vmatpush.msra.mxu0 0.0
    %1601 = vmatpush.msra.mxu0 0.0
    %1602 = vmatpush.msra.mxu0 0.0
    %1603 = vmatpush.msra.mxu0 0.0
    %1604 = vmatpush.msra.mxu0 0.0
    %1605 = vmatpush.msra.mxu0 0.0
    %1606 = vmatpush.msra.mxu0 0.0
    %1607 = vmatpush.msra.mxu0 0.0
    %1608 = vmatpush.msra.mxu0 0.0
    %1609 = vmatpush.msra.mxu0 %v382
    %1610 = vmatmul.f32.gmra.mxu0 %v1592
    %v1611 = vpop.f32.mrf.mxu0
    %v1612 = vadd.f32 0.0, %v1611
    %1613 = vdwg.mxu0
    %v1614 = vadd.f32 %v1480, %v1612
    %v1615 = vadd.f32 %v1614, %v406
    %v1616 = vmul.f32 %v1615, 0.5
    %v1617 = vtanh.pop %v1616
    %v1618 = vadd.f32 %v1617, 1.0
    %v1619 = vmul.f32 %v1618, 0.5
    %v1620 = vtanh.pop %v1615
    %v1621 = vmul.f32 %v1619, %v1429
    %1623 = vrot.lane.b32.xlu0 %v1620, 96
    %v1624 = vpop.permute.xlu0 %1623
    %v1626 = vmul.f32 %v1619, %v1624
    %1628 = vrot.lane.b32.xlu0 %v1626, 16
    %v1629 = vpop.permute.xlu0 %1628
    %v1631 = vadd.f32 %v1621, %v1629
    %v1632 = vtanh.pop %v1631
    %1634 = vrot.lane.b32.xlu0 %v1632, 32
    %v1635 = vpop.permute.xlu0 %1634
    %v1637 = vmul.f32 %v1619, %v1635
    %v1638 = vadd.f32 %v1436, %v1637
    %1640 = vrot.lane.b32.xlu0 %v1637, 80
    %v1641 = vpop.permute.xlu0 %1640
    %v1642 = vsel %vm230, %v1641, 0
    %1644 = vmatpush.msra.mxu0 0.0
    %1645 = vmatpush.msra.mxu0 0.0
    %1646 = vmatpush.msra.mxu0 0.0
    %1647 = vmatpush.msra.mxu0 0.0
    %1648 = vmatpush.msra.mxu0 0.0
    %1649 = vmatpush.msra.mxu0 0.0
    %1650 = vmatpush.msra.mxu0 0.0
    %1651 = vmatpush.msra.mxu0 0.0
    %1652 = vmatpush.msra.mxu0 0.0
    %1653 = vmatpush.msra.mxu0 0.0
    %1654 = vmatpush.msra.mxu0 0.0
    %1655 = vmatpush.msra.mxu0 0.0
    %1656 = vmatpush.msra.mxu0 0.0
    %1657 = vmatpush.msra.mxu0 0.0
    %1658 = vmatpush.msra.mxu0 %v31
    %1659 = vmatpush.msra.mxu0 %v29
    %1660 = vmatmul.f32.gmra.mxu0 %v1642
    %v1661 = vpop.f32.mrf.mxu0
    %v1662 = vadd.f32 0.0, %v1661
    %1663 = vdwg.mxu0
    %1664 = vmatpush.msra.mxu0 0.0
    %1665 = vmatpush.msra.mxu0 0.0
    %1666 = vmatpush.msra.mxu0 0.0
    %1667 = vmatpush.msra.mxu0 0.0
    %1668 = vmatpush.msra.mxu0 0.0
    %1669 = vmatpush.msra.mxu0 0.0
    %1670 = vmatpush.msra.mxu0 0.0
    %1671 = vmatpush.msra.mxu0 0.0
    %1672 = vmatpush.msra.mxu0 0.0
    %1673 = vmatpush.msra.mxu0 0.0
    %1674 = vmatpush.msra.mxu0 0.0
    %1675 = vmatpush.msra.mxu0 0.0
    %1676 = vmatpush.msra.mxu0 0.0
    %1677 = vmatpush.msra.mxu0 0.0
    %1678 = vmatpush.msra.mxu0 %v32
    %1679 = vmatpush.msra.mxu0 %v30
    %1680 = vmatmul.f32.gmra.mxu0 %v1642
    %v1681 = vpop.f32.mrf.mxu0
    %v1682 = vadd.f32 0.0, %v1681
    %1683 = vdwg.mxu0
    %1684 = vrot.lane.b32.xlu0 %v111, 121
    %v1685 = vpop.permute.xlu0 %1684
    %v1687 = vadd.f32 %v1662, %v1685
    %v1688 = vadd.f32 %v1687, %v38
    %v1689 = vtanh.pop %v1688
    %v1690 = vmul.f32 %v1689, 1.442695
    %v1691 = vpow.pop %v1690
    %v1692 = vsel %vm279, %v1691, 0.0
    %1693 = vadd.xlane.f32.xlu0 %v1692
    %v1694 = vpop.xlane.xlu0 %1693
    %v1695 = vrcp.pop %v1694
    %v1696 = vmul.f32 %v1694, %v1695
    %v1697 = vsub.f32 1.0, %v1696
    %v1698 = vmul.f32 %v1695, %v1697
    %v1699 = vadd.f32 %v1695, %v1698
    %vm1700 = vweird.f32 %v1694
    %vm1701 = vweird.f32 %v1695
    %vm1702 = vmor %vm1700, %vm1701
    %v1703 = vsel %vm1702, %v1695, %v1699
    %v1704 = vand.u32 2147483647, %v1694
    %vm1705 = vcmp.eq.f32.partialorder %v1704, 8.507059e+37
    %v1706 = vand.u32 %v1694, 2147483648
    %v1707 = vor.u32 1.1754944e-38, %v1706
    %v1708 = vsel %vm1705, %v1707, %v1703
    %v1709 = vmul.f32 %v1691, %v1708
    %v1710 = vrot.slane %v222, 7
    %v1711 = vrot.slane %v223, 6
    %v1712 = vsel %vm95, %v1711, %v1710
    %v1713 = vrot.slane %v224, 5
    %v1714 = vsel %vm97, %v1713, %v1712
    %v1715 = vrot.slane %v225, 4
    %v1716 = vsel %vm99, %v1715, %v1714
    %v1717 = vrot.slane %v226, 3
    %v1718 = vsel %vm101, %v1717, %v1716
    %v1719 = vrot.slane %v227, 2
    %v1720 = vsel %vm103, %v1719, %v1718
    %v1721 = vrot.slane %v228, 1
    %v1722 = vsel %vm105, %v1721, %v1720
    %v1723 = vsel %vm107, %v229, %v1722
    %1724 = vrot.lane.b32.xlu0 %v1723, 3
    %v1725 = vpop.permute.xlu0 %1724
    %v1727 = vadd.f32 %v1662, %v1725
    %v1728 = vadd.f32 %v1727, %v38
    %v1729 = vtanh.pop %v1728
    %v1730 = vmul.f32 %v1729, 1.442695
    %v1731 = vpow.pop %v1730
    %1733 = vrot.lane.b32.xlu0 %v1731, 125
    %v1734 = vpop.permute.xlu0 %1733
    %v1736 = vsel %vm51, %v1734, 0.0
    %1737 = vadd.xlane.f32.xlu0 %v1736
    %v1738 = vpop.xlane.xlu0 %1737
    %v1739 = vrcp.pop %v1738
    %v1740 = vmul.f32 %v1738, %v1739
    %v1741 = vsub.f32 1.0, %v1740
    %v1742 = vmul.f32 %v1739, %v1741
    %v1743 = vadd.f32 %v1739, %v1742
    %vm1744 = vweird.f32 %v1738
    %vm1745 = vweird.f32 %v1739
    %vm1746 = vmor %vm1744, %vm1745
    %v1747 = vsel %vm1746, %v1739, %v1743
    %v1748 = vand.u32 2147483647, %v1738
    %vm1749 = vcmp.eq.f32.partialorder %v1748, 8.507059e+37
    %v1750 = vand.u32 %v1738, 2147483648
    %v1751 = vor.u32 1.1754944e-38, %v1750
    %v1752 = vsel %vm1749, %v1751, %v1747
    %v1753 = vmul.f32 %v1731, %v1752
    %1755 = vset.pattern.permute.xlu0 0
    %1756 = vperm.xlu0 %1755, %v1709
    %v1757 = vpop.permute.xlu0 %1756
    %v1759 = vmul.f32 %v1757, %v1378
    %v1760 = vadd.f32 %v1759, 0.0
    %1761 = vset.pattern.permute.xlu0 1
    %1762 = vperm.xlu0 %1761, %v1709
    %v1763 = vpop.permute.xlu0 %1762
    %v1765 = vmul.f32 %v1763, %v1580
    %v1766 = vadd.f32 %v1760, %v1765
    %1767 = vset.pattern.permute.xlu0 2
    %1768 = vperm.xlu0 %1767, %v1709
    %v1769 = vpop.permute.xlu0 %1768
    %v1771 = vsel %vm95, %v190, %v144
    %v1772 = vrot.slane %v23, 5
    %v1773 = vsel %vm97, %v1772, %v1771
    %v1774 = vrot.slane %v24, 4
    %v1775 = vsel %vm99, %v1774, %v1773
    %v1776 = vrot.slane %v25, 3
    %v1777 = vsel %vm101, %v1776, %v1775
    %v1778 = vrot.slane %v26, 2
    %v1779 = vsel %vm103, %v1778, %v1777
    %v1780 = vrot.slane %v27, 1
    %v1781 = vsel %vm105, %v1780, %v1779
    %v1782 = vsel %vm107, %v28, %v1781
    %v1784 = vmul.f32 %v1769, %v1782
    %v1785 = vadd.f32 %v1766, %v1784
    %1787 = vrot.lane.b32.xlu0 %v1785, 3
    %v1788 = vpop.permute.xlu0 %1787
    %v1790 = vmul.f32 %v1753, %v1788
    %1792 = vrot.lane.b32.xlu0 %v1790, 125
    %v1793 = vpop.permute.xlu0 %1792
    %v1794 = vsel %vm51, %v1793, 0
    %1796 = vmatpush.msra.mxu0 0.0
    %1797 = vmatpush.msra.mxu0 0.0
    %1798 = vmatpush.msra.mxu0 0.0
    %1799 = vmatpush.msra.mxu0 0.0
    %1800 = vmatpush.msra.mxu0 0.0
    %1801 = vmatpush.msra.mxu0 0.0
    %1802 = vmatpush.msra.mxu0 0.0
    %1803 = vmatpush.msra.mxu0 0.0
    %1804 = vmatpush.msra.mxu0 0.0
    %1805 = vmatpush.msra.mxu0 0.0
    %1806 = vmatpush.msra.mxu0 0.0
    %1807 = vmatpush.msra.mxu0 0.0
    %1808 = vmatpush.msra.mxu0 0.0
    %1809 = vmatpush.msra.mxu0 0.0
    %1810 = vmatpush.msra.mxu0 0.0
    %1811 = vmatpush.msra.mxu0 %v382
    %1812 = vmatmul.f32.gmra.mxu0 %v1794
    %v1813 = vpop.f32.mrf.mxu0
    %v1814 = vadd.f32 0.0, %v1813
    %1815 = vdwg.mxu0
    %v1816 = vadd.f32 %v1682, %v1814
    %v1817 = vadd.f32 %v1816, %v406
    %v1818 = vmul.f32 %v1817, 0.5
    %v1819 = vtanh.pop %v1818
    %v1820 = vadd.f32 %v1819, 1.0
    %v1821 = vmul.f32 %v1820, 0.5
    %v1822 = vtanh.pop %v1817
    %v1823 = vmul.f32 %v1821, %v1631
    %1825 = vrot.lane.b32.xlu0 %v1822, 96
    %v1826 = vpop.permute.xlu0 %1825
    %v1828 = vmul.f32 %v1821, %v1826
    %1830 = vrot.lane.b32.xlu0 %v1828, 16
    %v1831 = vpop.permute.xlu0 %1830
    %v1833 = vadd.f32 %v1823, %v1831
    %v1834 = vtanh.pop %v1833
    %1836 = vrot.lane.b32.xlu0 %v1834, 32
    %v1837 = vpop.permute.xlu0 %1836
    %v1839 = vmul.f32 %v1821, %v1837
    %v1840 = vadd.f32 %v1638, %v1839
    %1842 = vrot.lane.b32.xlu0 %v1840, 80
    %v1843 = vpop.permute.xlu0 %1842
    %v1844 = vsel %vm230, %v1843, 0
    %1846 = vmatpush.msra.mxu0 0.0
    %1847 = vmatpush.msra.mxu0 0.0
    %1848 = vmatpush.msra.mxu0 0.0
    %1849 = vmatpush.msra.mxu0 0.0
    %1850 = vmatpush.msra.mxu0 0.0
    %1851 = vmatpush.msra.mxu0 0.0
    %1852 = vmatpush.msra.mxu0 0.0
    %1853 = vmatpush.msra.mxu0 0.0
    %1854 = vmatpush.msra.mxu0 0.0
    %1855 = vmatpush.msra.mxu0 0.0
    %1856 = vmatpush.msra.mxu0 0.0
    %1857 = vmatpush.msra.mxu0 0.0
    %1858 = vmatpush.msra.mxu0 0.0
    %1859 = vmatpush.msra.mxu0 0.0
    %1860 = vmatpush.msra.mxu0 %v35
    %1861 = vmatpush.msra.mxu0 %v34
    %1862 = vmatmul.f32.gmra.mxu0 %v1844
    %v1863 = vpop.f32.mrf.mxu0
    %v1864 = vadd.f32 0.0, %v1863
    %1865 = vdwg.mxu0
    %1866 = vst [vmem:[#allocation2] sm:$0xff] %v1864
    // Predicated region
    $region22: #{tpu_custom_call.1} parent=1 // pred_check
      _
    $region23: #{tpu_custom_call.1} parent=1 // pred_check_branch
      %1868 = sbr.rel (0) target = $region25
    $region24: #{tpu_custom_call.1} parent=1 // pred_region
      %1870 = vsyncadd [#allocation3], 0
      %s1872 = sshll.u32 [#allocation2], 4
      %s1873 = int_to_ptr.vmem [resolvable:$true] %s1872
      %s1874 = sshll.u32 %s5, 4
      %s1875 = int_to_ptr.hbm [resolvable:$true] %s1874
      %1877 = dma.vmem_to_hbm [thread:$0]  %s1873, 128, %s1875, [#allocation3]
    $region25: #{tpu_custom_call.1} parent=1 // pred_fallthru
      _
    // Predicated region
    $region26: #{tpu_custom_call.1} parent=1 // pred_check
      _
    $region27: #{tpu_custom_call.1} parent=1 // pred_check_branch
      %1879 = sbr.rel (0) target = $region29
    $region28: #{tpu_custom_call.1} parent=1 // pred_region
      %1881 = dma.done [#allocation3], 128
    $region29: #{tpu_custom_call.1} parent=1 // pred_fallthru
      _
    %1882 = vsyncpa [#allocation3], 1

</llo_original>
